<compile_context>
chip_gen: v7x
topology: tpu7x:2x2x1
jax: 0.10.0
libtpu: 0.0.40
codegen_flags: <defaults>
</compile_context>

<pallas_src>
import functools

import jax
import jax.numpy as jnp
from jax.experimental import pallas as pl
from jax.experimental.pallas import tpu as pltpu

HIDDEN = 256
HEAD_PAD = 128  # value head padded 1 -> 128 output lanes for the in-VMEM MXU pass only


def critic_kernel(x_ref,
                  w1_ref, b1_ref,
                  w2_ref, b2_ref,
                  w3_ref, b3_ref,
                  w4_ref, b4_ref,
                  w5_ref, b5_ref,
                  o_ref, *, relu_dtype):
    """Fused 5-layer MLP: 4x (Linear + ReLU) + padded Linear head.

    bf16 matmul operands, f32 accumulation + bias; ReLU/downcast in `relu_dtype`
    (bf16 on v6e/v7x to halve VALU work, f32 on v5e). Only column 0 of the padded
    head is written back to HBM.
    """
    h = x_ref[...]  # already bf16 (cast in the wrapper)
    for w_ref, b_ref in ((w1_ref, b1_ref), (w2_ref, b2_ref),
                         (w3_ref, b3_ref), (w4_ref, b4_ref)):
        z = jnp.dot(h, w_ref[...], preferred_element_type=jnp.float32) + b_ref[...]
        h = jnp.maximum(z.astype(relu_dtype), 0).astype(jnp.bfloat16)

    v = jnp.dot(h, w5_ref[...], preferred_element_type=jnp.float32) + b5_ref[...]
    o_ref[...] = v[:, 0:1].astype(o_ref.dtype)


def _device_caps():
    """(num_tensorcores, is_v5e) — best-effort chip detection, safe fallback."""
    try:
        kind = jax.devices()[0].device_kind.lower()
    except Exception:  # pragma: no cover - be robust in odd environments
        kind = ""
    num_tc = 2 if "v7" in kind else 1
    is_v5 = "v5" in kind
    return num_tc, is_v5


def _pick_tile(B, *, min_grid=1, max_tile=2048):
    """Batch tile (multiple of 128, <= max_tile).

    Preference order: grid length >= min_grid (v7x: feed both TCs), minimal
    padding waste, then the largest tile (fewest grid steps / least fixed overhead).
    """
    best_key, best_tb = None, 128
    tb = 128
    while tb <= max_tile:
        b_pad = pl.cdiv(B, tb) * tb
        grid = b_pad // tb
        waste = b_pad - B
        key = (grid < min_grid, waste, -tb)
        if best_key is None or key < best_key:
            best_key, best_tb = key, tb
        tb *= 2
    return best_tb


def _tile_map(i):     # state / output: walk the batch tiles
    return (i, 0)


def _pinned_map(i):   # weights / biases: same block every step -> resident in VMEM
    return (0, 0)


def critic_forward(state, params, *, tile_b=None):
    """state: (B, state_size) f32.  Returns (B, 1) f32 value estimates."""
    B, S = state.shape
    num_tc, is_v5 = _device_caps()
    TB = tile_b or _pick_tile(B, min_grid=num_tc)
    B_pad = pl.cdiv(B, TB) * TB

    x = state
    if B_pad != B:
        x = jnp.pad(x, ((0, B_pad - B), (0, 0)))
    x = x.astype(jnp.bfloat16)  # halve state DMA; kernel consumes bf16 directly

    relu_dtype = jnp.float32 if is_v5 else jnp.bfloat16
    kernel = functools.partial(critic_kernel, relu_dtype=relu_dtype)

    in_specs = [
        pl.BlockSpec((TB, S), _tile_map),
        pl.BlockSpec((S, HIDDEN), _pinned_map),        pl.BlockSpec((1, HIDDEN), _pinned_map),
        pl.BlockSpec((HIDDEN, HIDDEN), _pinned_map),   pl.BlockSpec((1, HIDDEN), _pinned_map),
        pl.BlockSpec((HIDDEN, HIDDEN), _pinned_map),   pl.BlockSpec((1, HIDDEN), _pinned_map),
        pl.BlockSpec((HIDDEN, HIDDEN), _pinned_map),   pl.BlockSpec((1, HIDDEN), _pinned_map),
        pl.BlockSpec((HIDDEN, HEAD_PAD), _pinned_map), pl.BlockSpec((1, HEAD_PAD), _pinned_map),
    ]
    # Lane-sparse (TB, 1) store is ~64 masked vst per tile but a 128x smaller HBM
    # writeback than the previous (TB, 128) output — net large win.
    out_specs = pl.BlockSpec((TB, 1), _tile_map)

    out = pl.pallas_call(
        kernel,
        out_shape=jax.ShapeDtypeStruct((B_pad, 1), jnp.float32),
        grid=(B_pad // TB,),
        in_specs=in_specs,
        out_specs=out_specs,
        compiler_params=pltpu.CompilerParams(
            dimension_semantics=("parallel",)),
    )(x,
      params["w1"], params["b1"],
      params["w2"], params["b2"],
      params["w3"], params["b3"],
      params["w4"], params["b4"],
      params["w5p"], params["b5p"])

    # Drop padded tail rows; column is already just the value.
    return out[:B]


def init_critic_params(state_size, key):
    """Shapes match the PyTorch module (weights stored transposed as (in, out)):
       orthogonal weights (std=1.0) in bf16, constant bias 1e-6 in f32.
       The value head is zero-padded from 1 to HEAD_PAD output columns (VMEM only)."""
    sizes = [(state_size, HIDDEN), (HIDDEN, HIDDEN), (HIDDEN, HIDDEN),
             (HIDDEN, HIDDEN), (HIDDEN, 1)]
    ortho = jax.nn.initializers.orthogonal(scale=1.0)
    keys = jax.random.split(key, len(sizes))
    params = {}
    for i, ((fan_in, fan_out), k) in enumerate(zip(sizes, keys), start=1):
        w = ortho(k, (fan_in, fan_out), jnp.float32)
        b = jnp.full((1, fan_out), 1e-6, dtype=jnp.float32)
        if i == 5:
            params["w5p"] = jnp.pad(w, ((0, 0), (0, HEAD_PAD - fan_out))).astype(jnp.bfloat16)
            params["b5p"] = jnp.pad(b, ((0, 0), (0, HEAD_PAD - fan_out)))
        else:
            params[f"w{i}"] = w.astype(jnp.bfloat16)
            params[f"b{i}"] = b
    return params


def critic_ref(state, params, relu_dtype=jnp.bfloat16):
    """Pure-JAX reference with identical bf16-operand / f32-accumulate /
    relu_dtype-epilogue numerics."""
    h = state.astype(jnp.bfloat16)
    for i in range(1, 5):
        z = jnp.dot(h.astype(jnp.float32), params[f"w{i}"].astype(jnp.float32),
                    precision=jax.lax.Precision.HIGHEST) + params[f"b{i}"]
        h = jnp.maximum(z.astype(relu_dtype), 0).astype(jnp.bfloat16)
    v = jnp.dot(h.astype(jnp.float32), params["w5p"].astype(jnp.float32),
                precision=jax.lax.Precision.HIGHEST) + params["b5p"]
    return v[:, 0:1]


if __name__ == "__main__":
    key = jax.random.PRNGKey(0)
    k_param, k_state = jax.random.split(key)

    # Small demo shapes; batch intentionally not a multiple of the 128-row tile
    # to exercise the tail-padding path. In PPO, batch many rollout states per
    # call so the pinned weights and grid-step overhead are amortized.
    batch = 200
    state_size = 32

    params = init_critic_params(state_size, k_param)
    state = jax.random.normal(k_state, (batch, state_size), dtype=jnp.float32)

    out = jax.block_until_ready(critic_forward(state, params))

    _, _is_v5 = _device_caps()
    ref = critic_ref(state, params,
                     relu_dtype=jnp.float32 if _is_v5 else jnp.bfloat16)

    assert out.shape == (batch, 1), out.shape
    assert jnp.allclose(out, ref, atol=2e-3, rtol=2e-3), (
        float(jnp.max(jnp.abs(out - ref))))

    print("KERNEL_OK")
</pallas_src>

<mosaic_0001>
module attributes {stable_mosaic.version = 11 : i64} {
  func.func @critic_kernel(%arg0: i32, %arg1: memref<256x32xbf16, #tpu.memory_space<vmem>>, %arg2: memref<32x256xbf16, #tpu.memory_space<vmem>>, %arg3: memref<1x256xf32, #tpu.memory_space<vmem>>, %arg4: memref<256x256xbf16, #tpu.memory_space<vmem>>, %arg5: memref<1x256xf32, #tpu.memory_space<vmem>>, %arg6: memref<256x256xbf16, #tpu.memory_space<vmem>>, %arg7: memref<1x256xf32, #tpu.memory_space<vmem>>, %arg8: memref<256x256xbf16, #tpu.memory_space<vmem>>, %arg9: memref<1x256xf32, #tpu.memory_space<vmem>>, %arg10: memref<256x128xbf16, #tpu.memory_space<vmem>>, %arg11: memref<1x128xf32, #tpu.memory_space<vmem>>, %arg12: memref<256x1xf32, #tpu.memory_space<vmem>>) attributes {dimension_semantics = [#tpu.dimension_semantics<parallel>], iteration_bounds = array<i64: 1>, scalar_prefetch = 0 : i64, scratch_operands = 0 : i64, tpu.core_type = #tpu.core_type<tc>, window_params = [{transform_indices = @transform_0, window_bounds = array<i64: 256, 32>}, {pipeline_mode = #tpu.pipeline_mode<synchronous>, transform_indices = @transform_1, window_bounds = array<i64: 32, 256>}, {pipeline_mode = #tpu.pipeline_mode<synchronous>, transform_indices = @transform_2, window_bounds = array<i64: 1, 256>}, {pipeline_mode = #tpu.pipeline_mode<synchronous>, transform_indices = @transform_3, window_bounds = array<i64: 256, 256>}, {pipeline_mode = #tpu.pipeline_mode<synchronous>, transform_indices = @transform_4, window_bounds = array<i64: 1, 256>}, {pipeline_mode = #tpu.pipeline_mode<synchronous>, transform_indices = @transform_5, window_bounds = array<i64: 256, 256>}, {pipeline_mode = #tpu.pipeline_mode<synchronous>, transform_indices = @transform_6, window_bounds = array<i64: 1, 256>}, {pipeline_mode = #tpu.pipeline_mode<synchronous>, transform_indices = @transform_7, window_bounds = array<i64: 256, 256>}, {pipeline_mode = #tpu.pipeline_mode<synchronous>, transform_indices = @transform_8, window_bounds = array<i64: 1, 256>}, {pipeline_mode = #tpu.pipeline_mode<synchronous>, transform_indices = @transform_9, window_bounds = array<i64: 256, 128>}, {pipeline_mode = #tpu.pipeline_mode<synchronous>, transform_indices = @transform_10, window_bounds = array<i64: 1, 128>}, {transform_indices = @transform_11, window_bounds = array<i64: 256, 1>}]} {
    %c0 = arith.constant 0 : index
    %c0_0 = arith.constant 0 : index
    %0 = vector.load %arg1[%c0, %c0_0] : memref<256x32xbf16, #tpu.memory_space<vmem>>, vector<256x32xbf16>
    %c0_1 = arith.constant 0 : index
    %c0_2 = arith.constant 0 : index
    %1 = vector.load %arg2[%c0_1, %c0_2] : memref<32x256xbf16, #tpu.memory_space<vmem>>, vector<32x256xbf16>
    %cst = arith.constant dense<0.000000e+00> : vector<256x256xf32>
    %2 = tpu.matmul %0, %1, %cst {dimension_numbers = #tpu.dot_dimension_numbers<[1], [0], [0], [1], [0, 0, 1, 1], [], []>} : vector<256x32xbf16>, vector<32x256xbf16>, vector<256x256xf32> -> vector<256x256xf32>
    %c0_3 = arith.constant 0 : index
    %c0_4 = arith.constant 0 : index
    %3 = vector.load %arg3[%c0_3, %c0_4] : memref<1x256xf32, #tpu.memory_space<vmem>>, vector<1x256xf32>
    %4 = vector.broadcast %3 : vector<1x256xf32> to vector<256x256xf32>
    %5 = arith.addf %2, %4 : vector<256x256xf32>
    %6 = arith.truncf %5 : vector<256x256xf32> to vector<256x256xbf16>
    %cst_5 = arith.constant 0.000000e+00 : bf16
    %7 = vector.broadcast %cst_5 : bf16 to vector<256x256xbf16>
    %8 = arith.maximumf %6, %7 : vector<256x256xbf16>
    %c0_6 = arith.constant 0 : index
    %c0_7 = arith.constant 0 : index
    %9 = vector.load %arg4[%c0_6, %c0_7] : memref<256x256xbf16, #tpu.memory_space<vmem>>, vector<256x256xbf16>
    %cst_8 = arith.constant dense<0.000000e+00> : vector<256x256xf32>
    %10 = tpu.matmul %8, %9, %cst_8 {dimension_numbers = #tpu.dot_dimension_numbers<[1], [0], [0], [1], [0, 0, 1, 1], [], []>} : vector<256x256xbf16>, vector<256x256xbf16>, vector<256x256xf32> -> vector<256x256xf32>
    %c0_9 = arith.constant 0 : index
    %c0_10 = arith.constant 0 : index
    %11 = vector.load %arg5[%c0_9, %c0_10] : memref<1x256xf32, #tpu.memory_space<vmem>>, vector<1x256xf32>
    %12 = vector.broadcast %11 : vector<1x256xf32> to vector<256x256xf32>
    %13 = arith.addf %10, %12 : vector<256x256xf32>
    %14 = arith.truncf %13 : vector<256x256xf32> to vector<256x256xbf16>
    %cst_11 = arith.constant 0.000000e+00 : bf16
    %15 = vector.broadcast %cst_11 : bf16 to vector<256x256xbf16>
    %16 = arith.maximumf %14, %15 : vector<256x256xbf16>
    %c0_12 = arith.constant 0 : index
    %c0_13 = arith.constant 0 : index
    %17 = vector.load %arg6[%c0_12, %c0_13] : memref<256x256xbf16, #tpu.memory_space<vmem>>, vector<256x256xbf16>
    %cst_14 = arith.constant dense<0.000000e+00> : vector<256x256xf32>
    %18 = tpu.matmul %16, %17, %cst_14 {dimension_numbers = #tpu.dot_dimension_numbers<[1], [0], [0], [1], [0, 0, 1, 1], [], []>} : vector<256x256xbf16>, vector<256x256xbf16>, vector<256x256xf32> -> vector<256x256xf32>
    %c0_15 = arith.constant 0 : index
    %c0_16 = arith.constant 0 : index
    %19 = vector.load %arg7[%c0_15, %c0_16] : memref<1x256xf32, #tpu.memory_space<vmem>>, vector<1x256xf32>
    %20 = vector.broadcast %19 : vector<1x256xf32> to vector<256x256xf32>
    %21 = arith.addf %18, %20 : vector<256x256xf32>
    %22 = arith.truncf %21 : vector<256x256xf32> to vector<256x256xbf16>
    %cst_17 = arith.constant 0.000000e+00 : bf16
    %23 = vector.broadcast %cst_17 : bf16 to vector<256x256xbf16>
    %24 = arith.maximumf %22, %23 : vector<256x256xbf16>
    %c0_18 = arith.constant 0 : index
    %c0_19 = arith.constant 0 : index
    %25 = vector.load %arg8[%c0_18, %c0_19] : memref<256x256xbf16, #tpu.memory_space<vmem>>, vector<256x256xbf16>
    %cst_20 = arith.constant dense<0.000000e+00> : vector<256x256xf32>
    %26 = tpu.matmul %24, %25, %cst_20 {dimension_numbers = #tpu.dot_dimension_numbers<[1], [0], [0], [1], [0, 0, 1, 1], [], []>} : vector<256x256xbf16>, vector<256x256xbf16>, vector<256x256xf32> -> vector<256x256xf32>
    %c0_21 = arith.constant 0 : index
    %c0_22 = arith.constant 0 : index
    %27 = vector.load %arg9[%c0_21, %c0_22] : memref<1x256xf32, #tpu.memory_space<vmem>>, vector<1x256xf32>
    %28 = vector.broadcast %27 : vector<1x256xf32> to vector<256x256xf32>
    %29 = arith.addf %26, %28 : vector<256x256xf32>
    %30 = arith.truncf %29 : vector<256x256xf32> to vector<256x256xbf16>
    %cst_23 = arith.constant 0.000000e+00 : bf16
    %31 = vector.broadcast %cst_23 : bf16 to vector<256x256xbf16>
    %32 = arith.maximumf %30, %31 : vector<256x256xbf16>
    %c0_24 = arith.constant 0 : index
    %c0_25 = arith.constant 0 : index
    %33 = vector.load %arg10[%c0_24, %c0_25] : memref<256x128xbf16, #tpu.memory_space<vmem>>, vector<256x128xbf16>
    %cst_26 = arith.constant dense<0.000000e+00> : vector<256x128xf32>
    %34 = tpu.matmul %32, %33, %cst_26 {dimension_numbers = #tpu.dot_dimension_numbers<[1], [0], [0], [1], [0, 0, 1, 1], [], []>} : vector<256x256xbf16>, vector<256x128xbf16>, vector<256x128xf32> -> vector<256x128xf32>
    %c0_27 = arith.constant 0 : index
    %c0_28 = arith.constant 0 : index
    %35 = vector.load %arg11[%c0_27, %c0_28] : memref<1x128xf32, #tpu.memory_space<vmem>>, vector<1x128xf32>
    %36 = vector.broadcast %35 : vector<1x128xf32> to vector<256x128xf32>
    %37 = arith.addf %34, %36 : vector<256x128xf32>
    %38 = vector.extract_strided_slice %37 {offsets = [0, 0], sizes = [256, 1], strides = [1, 1]} : vector<256x128xf32> to vector<256x1xf32>
    %c0_29 = arith.constant 0 : index
    %c0_30 = arith.constant 0 : index
    %39 = vector.load %arg12[%c0_29, %c0_30] : memref<256x1xf32, #tpu.memory_space<vmem>>, vector<256x1xf32>
    tpu.vector_store %arg12[%c0_29, %c0_30], %38 {strides = array<i32>} : memref<256x1xf32, #tpu.memory_space<vmem>>, vector<256x1xf32>,
    return
  }
  func.func @transform_0(%arg0: i32) -> (i32, i32) {
    %c0_i32 = arith.constant 0 : i32
    %c0_i32_0 = arith.constant 0 : i32
    return %arg0, %c0_i32 : i32, i32
  }
  func.func @transform_1(%arg0: i32) -> (i32, i32) {
    %c0_i32 = arith.constant 0 : i32
    %c0_i32_0 = arith.constant 0 : i32
    %c0_i32_1 = arith.constant 0 : i32
    return %c0_i32, %c0_i32_0 : i32, i32
  }
  func.func @transform_2(%arg0: i32) -> (i32, i32) {
    %c0_i32 = arith.constant 0 : i32
    %c0_i32_0 = arith.constant 0 : i32
    %c0_i32_1 = arith.constant 0 : i32
    return %c0_i32, %c0_i32_0 : i32, i32
  }
  func.func @transform_3(%arg0: i32) -> (i32, i32) {
    %c0_i32 = arith.constant 0 : i32
    %c0_i32_0 = arith.constant 0 : i32
    %c0_i32_1 = arith.constant 0 : i32
    return %c0_i32, %c0_i32_0 : i32, i32
  }
  func.func @transform_4(%arg0: i32) -> (i32, i32) {
    %c0_i32 = arith.constant 0 : i32
    %c0_i32_0 = arith.constant 0 : i32
    %c0_i32_1 = arith.constant 0 : i32
    return %c0_i32, %c0_i32_0 : i32, i32
  }
  func.func @transform_5(%arg0: i32) -> (i32, i32) {
    %c0_i32 = arith.constant 0 : i32
    %c0_i32_0 = arith.constant 0 : i32
    %c0_i32_1 = arith.constant 0 : i32
    return %c0_i32, %c0_i32_0 : i32, i32
  }
  func.func @transform_6(%arg0: i32) -> (i32, i32) {
    %c0_i32 = arith.constant 0 : i32
    %c0_i32_0 = arith.constant 0 : i32
    %c0_i32_1 = arith.constant 0 : i32
    return %c0_i32, %c0_i32_0 : i32, i32
  }
  func.func @transform_7(%arg0: i32) -> (i32, i32) {
    %c0_i32 = arith.constant 0 : i32
    %c0_i32_0 = arith.constant 0 : i32
    %c0_i32_1 = arith.constant 0 : i32
    return %c0_i32, %c0_i32_0 : i32, i32
  }
  func.func @transform_8(%arg0: i32) -> (i32, i32) {
    %c0_i32 = arith.constant 0 : i32
    %c0_i32_0 = arith.constant 0 : i32
    %c0_i32_1 = arith.constant 0 : i32
    return %c0_i32, %c0_i32_0 : i32, i32
  }
  func.func @transform_9(%arg0: i32) -> (i32, i32) {
    %c0_i32 = arith.constant 0 : i32
    %c0_i32_0 = arith.constant 0 : i32
    %c0_i32_1 = arith.constant 0 : i32
    return %c0_i32, %c0_i32_0 : i32, i32
  }
  func.func @transform_10(%arg0: i32) -> (i32, i32) {
    %c0_i32 = arith.constant 0 : i32
    %c0_i32_0 = arith.constant 0 : i32
    %c0_i32_1 = arith.constant 0 : i32
    return %c0_i32, %c0_i32_0 : i32, i32
  }
  func.func @transform_11(%arg0: i32) -> (i32, i32) {
    %c0_i32 = arith.constant 0 : i32
    %c0_i32_0 = arith.constant 0 : i32
    return %arg0, %c0_i32 : i32, i32
  }
}

</mosaic_0001>

<llo_original>
// kernel: tpu_custom_call.1
$region0: #{tpu_custom_call.1}
  #allocation0 [shape = 'u32[]', space=smem, size = 0x4, offset = 0x4, fixed_abs, tag = 'smem constant byte address 0x4 - core index']
  #allocation1 [shape = 'u32[144,128]{1,0:T(1,128)}', space=vmem, size = 0x12000, scoped, tag = 'internal scratch']
  %s0 = inlined_call_operand.vmem [shape: bf16[256,32], index: 0, kind: input, shape index: {}]
  %s1 = inlined_call_operand.vmem [shape: bf16[32,256], index: 1, kind: input, shape index: {}]
  %s2 = inlined_call_operand.vmem [shape: f32[1,256], index: 2, kind: input, shape index: {}]
  %s3 = inlined_call_operand.hbm [shape: bf16[256,256], index: 3, kind: input, shape index: {}]
  %s4 = inlined_call_operand.vmem [shape: f32[1,256], index: 4, kind: input, shape index: {}]
  %s5 = inlined_call_operand.hbm [shape: bf16[256,256], index: 5, kind: input, shape index: {}]
  %s6 = inlined_call_operand.vmem [shape: f32[1,256], index: 6, kind: input, shape index: {}]
  %s7 = inlined_call_operand.hbm [shape: bf16[256,256], index: 7, kind: input, shape index: {}]
  %s8 = inlined_call_operand.vmem [shape: f32[1,256], index: 8, kind: input, shape index: {}]
  %s9 = inlined_call_operand.vmem [shape: bf16[256,128], index: 9, kind: input, shape index: {}]
  %s10 = inlined_call_operand.vmem [shape: f32[1,128], index: 10, kind: input, shape index: {}]
  %s11 = inlined_call_operand.vmem [shape: f32[256,1], index: 11, kind: output, shape index: {}]
  %s12 = sld [smem:[#allocation0]]
  $region66: #{tpu_custom_call.1} parent=0
    _
  %s14 = ssub.s32 1, %s12
  %s15 = scalar_select 0, %s14, %s12
  $region1: #{tpu_custom_call.1} parent=0
    #allocation2 [shape = 'u8[131072]{0}', space=vmem, size = 0x20000, scoped, tag = 'input window, operand 3, single buffered']
    #allocation3 [shape = 's32[1]{0}', space=sflag, size = 0x4, scoped, tag = 'scoped memory for tpu_custom_call.1']
    #allocation4 [shape = 'u8[131072]{0}', space=vmem, size = 0x20000, scoped, tag = 'input window, operand 5, single buffered']
    #allocation5 [shape = 's32[1]{0}', space=sflag, size = 0x4, scoped, tag = 'scoped memory for tpu_custom_call.1']
    #allocation6 [shape = 'u8[131072]{0}', space=vmem, size = 0x20000, scoped, tag = 'input window, operand 7, single buffered']
    %16 = vsyncpa [#allocation3], 0
    %17 = vsyncpa [#allocation5], 0
    // Predicated region
    $region2: #{tpu_custom_call.1} parent=1 // pred_check
      _
    $region3: #{tpu_custom_call.1} parent=1 // pred_check_branch
      %19 = sbr.rel (0) target = $region5
    $region4: #{tpu_custom_call.1} parent=1 // pred_region
      _
    $region5: #{tpu_custom_call.1} parent=1 // pred_fallthru
      _
    // Predicated region
    $region6: #{tpu_custom_call.1} parent=1 // pred_check
      _
    $region7: #{tpu_custom_call.1} parent=1 // pred_check_branch
      %21 = sbr.rel (0) target = $region9
    $region8: #{tpu_custom_call.1} parent=1 // pred_region
      _
    $region9: #{tpu_custom_call.1} parent=1 // pred_fallthru
      _
    // Predicated region
    $region10: #{tpu_custom_call.1} parent=1 // pred_check
      _
    $region11: #{tpu_custom_call.1} parent=1 // pred_check_branch
      %23 = sbr.rel (0) target = $region13
    $region12: #{tpu_custom_call.1} parent=1 // pred_region
      _
    $region13: #{tpu_custom_call.1} parent=1 // pred_fallthru
      _
    // Predicated region
    $region14: #{tpu_custom_call.1} parent=1 // pred_check
      _
    $region15: #{tpu_custom_call.1} parent=1 // pred_check_branch
      %25 = sbr.rel (0) target = $region17
    $region16: #{tpu_custom_call.1} parent=1 // pred_region
      %s27 = ssub.s32 4096, 4096
      %28 = vsyncadd [#allocation3], %s27
      %s29 = sshll.u32 [#allocation2], 4
      %s30 = int_to_ptr.vmem [resolvable:$true] %s29
      %35 = dma.hbm_to_vmem [thread:$0]  %s3, 4096, %s30, [#allocation3], 128, 128, 8
    $region17: #{tpu_custom_call.1} parent=1 // pred_fallthru
      _
    // Predicated region
    $region18: #{tpu_custom_call.1} parent=1 // pred_check
      _
    $region19: #{tpu_custom_call.1} parent=1 // pred_check_branch
      %37 = sbr.rel (0) target = $region21
    $region20: #{tpu_custom_call.1} parent=1 // pred_region
      _
    $region21: #{tpu_custom_call.1} parent=1 // pred_fallthru
      _
    // Predicated region
    $region22: #{tpu_custom_call.1} parent=1 // pred_check
      _
    $region23: #{tpu_custom_call.1} parent=1 // pred_check_branch
      %39 = sbr.rel (0) target = $region25
    $region24: #{tpu_custom_call.1} parent=1 // pred_region
      %s41 = ssub.s32 4096, 4096
      %42 = vsyncadd [#allocation5], %s41
      %s43 = sshll.u32 [#allocation4], 4
      %s44 = int_to_ptr.vmem [resolvable:$true] %s43
      %49 = dma.hbm_to_vmem [thread:$0]  %s5, 4096, %s44, [#allocation5], 128, 128, 8
    $region25: #{tpu_custom_call.1} parent=1 // pred_fallthru
      _
    // Predicated region
    $region26: #{tpu_custom_call.1} parent=1 // pred_check
      _
    $region27: #{tpu_custom_call.1} parent=1 // pred_check_branch
      %51 = sbr.rel (0) target = $region29
    $region28: #{tpu_custom_call.1} parent=1 // pred_region
      _
    $region29: #{tpu_custom_call.1} parent=1 // pred_fallthru
      _
    // Predicated region
    $region30: #{tpu_custom_call.1} parent=1 // pred_check
      _
    $region31: #{tpu_custom_call.1} parent=1 // pred_check_branch
      %53 = sbr.rel (0) target = $region33
    $region32: #{tpu_custom_call.1} parent=1 // pred_region
      %s55 = ssub.s32 4096, 4096
      %56 = vsyncadd [#allocation5], %s55
      %s57 = sshll.u32 [#allocation6], 4
      %s58 = int_to_ptr.vmem [resolvable:$true] %s57
      %63 = dma.hbm_to_vmem [thread:$0]  %s7, 4096, %s58, [#allocation5], 128, 128, 8
    $region33: #{tpu_custom_call.1} parent=1 // pred_fallthru
      _
    // Predicated region
    $region34: #{tpu_custom_call.1} parent=1 // pred_check
      _
    $region35: #{tpu_custom_call.1} parent=1 // pred_check_branch
      %65 = sbr.rel (0) target = $region37
    $region36: #{tpu_custom_call.1} parent=1 // pred_region
      _
    $region37: #{tpu_custom_call.1} parent=1 // pred_fallthru
      _
    // Predicated region
    $region38: #{tpu_custom_call.1} parent=1 // pred_check
      _
    $region39: #{tpu_custom_call.1} parent=1 // pred_check_branch
      %67 = sbr.rel (0) target = $region41
    $region40: #{tpu_custom_call.1} parent=1 // pred_region
      _
    $region41: #{tpu_custom_call.1} parent=1 // pred_fallthru
      _
    // Predicated region
    $region42: #{tpu_custom_call.1} parent=1 // pred_check
      _
    $region43: #{tpu_custom_call.1} parent=1 // pred_check_branch
      %69 = sbr.rel (0) target = $region45
    $region44: #{tpu_custom_call.1} parent=1 // pred_region
      _
    $region45: #{tpu_custom_call.1} parent=1 // pred_fallthru
      _
    // Predicated region
    $region46: #{tpu_custom_call.1} parent=1 // pred_check
      _
    $region47: #{tpu_custom_call.1} parent=1 // pred_check_branch
      %71 = sbr.rel (0) target = $region49
    $region48: #{tpu_custom_call.1} parent=1 // pred_region
      %72 = dma.done [#allocation3], 4096
    $region49: #{tpu_custom_call.1} parent=1 // pred_fallthru
      _
    // Predicated region
    $region50: #{tpu_custom_call.1} parent=1 // pred_check
      _
    $region51: #{tpu_custom_call.1} parent=1 // pred_check_branch
      %74 = sbr.rel (0) target = $region53
    $region52: #{tpu_custom_call.1} parent=1 // pred_region
      %75 = dma.done [#allocation5], 4096
    $region53: #{tpu_custom_call.1} parent=1 // pred_fallthru
      _
    // Predicated region
    $region54: #{tpu_custom_call.1} parent=1 // pred_check
      _
    $region55: #{tpu_custom_call.1} parent=1 // pred_check_branch
      %77 = sbr.rel (0) target = $region57
    $region56: #{tpu_custom_call.1} parent=1 // pred_region
      %78 = dma.done [#allocation5], 4096
    $region57: #{tpu_custom_call.1} parent=1 // pred_fallthru
      _
    %v80 = vld [vmem:[%s0] sm:$0xf]
    %v81 = vld [vmem:[%s0 + $0x4] sm:$0xf]
    %v82 = vld [vmem:[%s0 + $0x8] sm:$0xf]
    %v83 = vld [vmem:[%s0 + $0xc] sm:$0xf]
    %v84 = vld [vmem:[%s0 + $0x10] sm:$0xf]
    %v85 = vld [vmem:[%s0 + $0x14] sm:$0xf]
    %v86 = vld [vmem:[%s0 + $0x18] sm:$0xf]
    %v87 = vld [vmem:[%s0 + $0x1c] sm:$0xf]
    %v88 = vld [vmem:[%s0 + $0x20] sm:$0xf]
    %v89 = vld [vmem:[%s0 + $0x24] sm:$0xf]
    %v90 = vld [vmem:[%s0 + $0x28] sm:$0xf]
    %v91 = vld [vmem:[%s0 + $0x2c] sm:$0xf]
    %v92 = vld [vmem:[%s0 + $0x30] sm:$0xf]
    %v93 = vld [vmem:[%s0 + $0x34] sm:$0xf]
    %v94 = vld [vmem:[%s0 + $0x38] sm:$0xf]
    %v95 = vld [vmem:[%s0 + $0x3c] sm:$0xf]
    %v96 = vld [vmem:[%s0 + $0x40] sm:$0xf]
    %v97 = vld [vmem:[%s0 + $0x44] sm:$0xf]
    %v98 = vld [vmem:[%s0 + $0x48] sm:$0xf]
    %v99 = vld [vmem:[%s0 + $0x4c] sm:$0xf]
    %v100 = vld [vmem:[%s0 + $0x50] sm:$0xf]
    %v101 = vld [vmem:[%s0 + $0x54] sm:$0xf]
    %v102 = vld [vmem:[%s0 + $0x58] sm:$0xf]
    %v103 = vld [vmem:[%s0 + $0x5c] sm:$0xf]
    %v104 = vld [vmem:[%s0 + $0x60] sm:$0xf]
    %v105 = vld [vmem:[%s0 + $0x64] sm:$0xf]
    %v106 = vld [vmem:[%s0 + $0x68] sm:$0xf]
    %v107 = vld [vmem:[%s0 + $0x6c] sm:$0xf]
    %v108 = vld [vmem:[%s0 + $0x70] sm:$0xf]
    %v109 = vld [vmem:[%s0 + $0x74] sm:$0xf]
    %v110 = vld [vmem:[%s0 + $0x78] sm:$0xf]
    %v111 = vld [vmem:[%s0 + $0x7c] sm:$0xf]
    %v112 = vld [vmem:[%s1] sm:$0xff]
    %v113 = vld [vmem:[%s1 + $0x8] sm:$0xff]
    %v114 = vld [vmem:[%s1 + $0x10] sm:$0xff]
    %v115 = vld [vmem:[%s1 + $0x18] sm:$0xff]
    %v116 = vld [vmem:[%s2] sm:$0x3]
    %v118 = vlaneseq
    %v119 = vshrl.u32 %v118, 7
    %v120 = vsub.s32 0, %v119
    %v121 = vrot.slane %v116, %v120
    %v122 = vlaneseq
    %v123 = vshrl.u32 %v122, 7
    %v124 = vsub.s32 1, %v123
    %v125 = vrot.slane %v116, %v124
    %v160 = vunpack.c.l.b16 %v80
    %v161 = vunpack.c.l.b16 %v81
    %v162 = vunpack.c.l.b16 %v82
    %v163 = vunpack.c.l.b16 %v83
    %v164 = vunpack.c.l.b16 %v84
    %v165 = vunpack.c.l.b16 %v85
    %v166 = vunpack.c.l.b16 %v86
    %v167 = vunpack.c.l.b16 %v87
    %v168 = vunpack.c.l.b16 %v88
    %v169 = vunpack.c.l.b16 %v89
    %v170 = vunpack.c.l.b16 %v90
    %v171 = vunpack.c.l.b16 %v91
    %v172 = vunpack.c.l.b16 %v92
    %v173 = vunpack.c.l.b16 %v93
    %v174 = vunpack.c.l.b16 %v94
    %v175 = vunpack.c.l.b16 %v95
    %v176 = vunpack.c.l.b16 %v96
    %v177 = vunpack.c.l.b16 %v97
    %v178 = vunpack.c.l.b16 %v98
    %v179 = vunpack.c.l.b16 %v99
    %v180 = vunpack.c.l.b16 %v100
    %v181 = vunpack.c.l.b16 %v101
    %v182 = vunpack.c.l.b16 %v102
    %v183 = vunpack.c.l.b16 %v103
    %v184 = vunpack.c.l.b16 %v104
    %v185 = vunpack.c.l.b16 %v105
    %v186 = vunpack.c.l.b16 %v106
    %v187 = vunpack.c.l.b16 %v107
    %v188 = vunpack.c.l.b16 %v108
    %v189 = vunpack.c.l.b16 %v109
    %v190 = vunpack.c.l.b16 %v110
    %v191 = vunpack.c.l.b16 %v111
    %v192 = vpack.c.b16 %v161, %v160
    %v193 = vpack.c.b16 %v163, %v162
    %v194 = vpack.c.b16 %v165, %v164
    %v195 = vpack.c.b16 %v167, %v166
    %v196 = vpack.c.b16 %v169, %v168
    %v197 = vpack.c.b16 %v171, %v170
    %v198 = vpack.c.b16 %v173, %v172
    %v199 = vpack.c.b16 %v175, %v174
    %v200 = vpack.c.b16 %v177, %v176
    %v201 = vpack.c.b16 %v179, %v178
    %v202 = vpack.c.b16 %v181, %v180
    %v203 = vpack.c.b16 %v183, %v182
    %v204 = vpack.c.b16 %v185, %v184
    %v205 = vpack.c.b16 %v187, %v186
    %v206 = vpack.c.b16 %v189, %v188
    %v207 = vpack.c.b16 %v191, %v190
    %v212 = vunpack.c.l.b16 %v112
    %v213 = vunpack.c.h.b16 %v112
    %v214 = vunpack.c.l.b16 %v113
    %v215 = vunpack.c.h.b16 %v113
    %v216 = vunpack.c.l.b16 %v114
    %v217 = vunpack.c.h.b16 %v114
    %v218 = vunpack.c.l.b16 %v115
    %v219 = vunpack.c.h.b16 %v115
    %v220 = vpack.c.b16 %v214, %v212
    %v221 = vpack.c.b16 %v215, %v213
    %v222 = vpack.c.b16 %v218, %v216
    %v223 = vpack.c.b16 %v219, %v217
    %vm228 = vcmask 261120
    %v230 = vsel %vm228, %v192, 0
    %v233 = vsel %vm228, %v193, 0
    %v236 = vsel %vm228, %v194, 0
    %v239 = vsel %vm228, %v195, 0
    %v242 = vsel %vm228, %v196, 0
    %v245 = vsel %vm228, %v197, 0
    %v248 = vsel %vm228, %v198, 0
    %v251 = vsel %vm228, %v199, 0
    %v254 = vsel %vm228, %v200, 0
    %v257 = vsel %vm228, %v201, 0
    %v260 = vsel %vm228, %v202, 0
    %v263 = vsel %vm228, %v203, 0
    %v266 = vsel %vm228, %v204, 0
    %v269 = vsel %vm228, %v205, 0
    %v272 = vsel %vm228, %v206, 0
    %v275 = vsel %vm228, %v207, 0
    %277 = vmatprep.subr.bf16.mxu0 %v221
    %278 = vmatpush1.bf16.msra.mxu0 %v220
    %279 = vmatprep.subr.bf16.mxu0 %v223
    %280 = vmatpush1.bf16.msra.mxu0 %v222
    %281 = vmatprep.subr.bf16.mxu0 0
    %282 = vmatpush1.bf16.msra.mxu0 0
    %283 = vmatprep.subr.bf16.mxu0 0
    %284 = vmatpush1.bf16.msra.mxu0 0
    %285 = vmatprep.subr.bf16.mxu0 0
    %286 = vmatpush1.bf16.msra.mxu0 0
    %287 = vmatprep.subr.bf16.mxu0 0
    %288 = vmatpush1.bf16.msra.mxu0 0
    %289 = vmatprep.subr.bf16.mxu0 0
    %290 = vmatpush1.bf16.msra.mxu0 0
    %291 = vmatprep.subr.bf16.mxu0 0
    %292 = vmatpush1.bf16.msra.mxu0 0
    %293 = vmatprep.subr.bf16.mxu0 0
    %294 = vmatpush1.bf16.msra.mxu0 0
    %295 = vmatprep.subr.bf16.mxu0 0
    %296 = vmatpush1.bf16.msra.mxu0 0
    %297 = vmatprep.subr.bf16.mxu0 0
    %298 = vmatpush1.bf16.msra.mxu0 0
    %299 = vmatprep.subr.bf16.mxu0 0
    %300 = vmatpush1.bf16.msra.mxu0 0
    %301 = vmatprep.subr.bf16.mxu0 0
    %302 = vmatpush1.bf16.msra.mxu0 0
    %303 = vmatprep.subr.bf16.mxu0 0
    %304 = vmatpush1.bf16.msra.mxu0 0
    %305 = vmatprep.subr.bf16.mxu0 0
    %306 = vmatpush1.bf16.msra.mxu0 0
    %307 = vmatprep.subr.bf16.mxu0 0
    %308 = vmatpush1.bf16.msra.mxu0 0
    %309 = vmatprep.mubr.bf16.mxu0 0
    %310 = vmatmul.mubr.bf16.gmra.mrb[0].mxu0 %v230
    %v311 = vpop.f32.mrb[0].mxu0
    %v312 = vadd.f32 %v121, %v311
    %v313 = vpop.f32.mrb[0].mxu0
    %v314 = vadd.f32 %v125, %v313
    %v315 = vpop.f32.mrb[0].mxu0
    %v316 = vadd.f32 %v121, %v315
    %v317 = vpop.f32.mrb[0].mxu0
    %v318 = vadd.f32 %v125, %v317
    %319 = vmatprep.mubr.bf16.mxu0 0
    %320 = vmatmul.mubr.bf16.gmra.mrb[0].mxu0 %v233
    %v321 = vpop.f32.mrb[0].mxu0
    %v322 = vadd.f32 %v121, %v321
    %v323 = vpop.f32.mrb[0].mxu0
    %v324 = vadd.f32 %v125, %v323
    %v325 = vpop.f32.mrb[0].mxu0
    %v326 = vadd.f32 %v121, %v325
    %v327 = vpop.f32.mrb[0].mxu0
    %v328 = vadd.f32 %v125, %v327
    %329 = vmatprep.mubr.bf16.mxu0 0
    %330 = vmatmul.mubr.bf16.gmra.mrb[0].mxu0 %v236
    %v331 = vpop.f32.mrb[0].mxu0
    %v332 = vadd.f32 %v121, %v331
    %v333 = vpop.f32.mrb[0].mxu0
    %v334 = vadd.f32 %v125, %v333
    %v335 = vpop.f32.mrb[0].mxu0
    %v336 = vadd.f32 %v121, %v335
    %v337 = vpop.f32.mrb[0].mxu0
    %v338 = vadd.f32 %v125, %v337
    %339 = vmatprep.mubr.bf16.mxu0 0
    %340 = vmatmul.mubr.bf16.gmra.mrb[0].mxu0 %v239
    %v341 = vpop.f32.mrb[0].mxu0
    %v342 = vadd.f32 %v121, %v341
    %v343 = vpop.f32.mrb[0].mxu0
    %v344 = vadd.f32 %v125, %v343
    %v345 = vpop.f32.mrb[0].mxu0
    %v346 = vadd.f32 %v121, %v345
    %v347 = vpop.f32.mrb[0].mxu0
    %v348 = vadd.f32 %v125, %v347
    %349 = vmatprep.mubr.bf16.mxu0 0
    %350 = vmatmul.mubr.bf16.gmra.mrb[0].mxu0 %v242
    %v351 = vpop.f32.mrb[0].mxu0
    %v352 = vadd.f32 %v121, %v351
    %v353 = vpop.f32.mrb[0].mxu0
    %v354 = vadd.f32 %v125, %v353
    %v355 = vpop.f32.mrb[0].mxu0
    %v356 = vadd.f32 %v121, %v355
    %v357 = vpop.f32.mrb[0].mxu0
    %v358 = vadd.f32 %v125, %v357
    %359 = vmatprep.mubr.bf16.mxu0 0
    %360 = vmatmul.mubr.bf16.gmra.mrb[0].mxu0 %v245
    %v361 = vpop.f32.mrb[0].mxu0
    %v362 = vadd.f32 %v121, %v361
    %v363 = vpop.f32.mrb[0].mxu0
    %v364 = vadd.f32 %v125, %v363
    %v365 = vpop.f32.mrb[0].mxu0
    %v366 = vadd.f32 %v121, %v365
    %v367 = vpop.f32.mrb[0].mxu0
    %v368 = vadd.f32 %v125, %v367
    %369 = vmatprep.mubr.bf16.mxu0 0
    %370 = vmatmul.mubr.bf16.gmra.mrb[0].mxu0 %v248
    %v371 = vpop.f32.mrb[0].mxu0
    %v372 = vadd.f32 %v121, %v371
    %v373 = vpop.f32.mrb[0].mxu0
    %v374 = vadd.f32 %v125, %v373
    %v375 = vpop.f32.mrb[0].mxu0
    %v376 = vadd.f32 %v121, %v375
    %v377 = vpop.f32.mrb[0].mxu0
    %v378 = vadd.f32 %v125, %v377
    %379 = vmatprep.mubr.bf16.mxu0 0
    %380 = vmatmul.mubr.bf16.gmra.mrb[0].mxu0 %v251
    %v381 = vpop.f32.mrb[0].mxu0
    %v382 = vadd.f32 %v121, %v381
    %v383 = vpop.f32.mrb[0].mxu0
    %v384 = vadd.f32 %v125, %v383
    %v385 = vpop.f32.mrb[0].mxu0
    %v386 = vadd.f32 %v121, %v385
    %v387 = vpop.f32.mrb[0].mxu0
    %v388 = vadd.f32 %v125, %v387
    %389 = vmatprep.mubr.bf16.mxu0 0
    %390 = vmatmul.mubr.bf16.gmra.mrb[0].mxu0 %v254
    %v391 = vpop.f32.mrb[0].mxu0
    %v392 = vadd.f32 %v121, %v391
    %v393 = vpop.f32.mrb[0].mxu0
    %v394 = vadd.f32 %v125, %v393
    %v395 = vpop.f32.mrb[0].mxu0
    %v396 = vadd.f32 %v121, %v395
    %v397 = vpop.f32.mrb[0].mxu0
    %v398 = vadd.f32 %v125, %v397
    %399 = vmatprep.mubr.bf16.mxu0 0
    %400 = vmatmul.mubr.bf16.gmra.mrb[0].mxu0 %v257
    %v401 = vpop.f32.mrb[0].mxu0
    %v402 = vadd.f32 %v121, %v401
    %v403 = vpop.f32.mrb[0].mxu0
    %v404 = vadd.f32 %v125, %v403
    %v405 = vpop.f32.mrb[0].mxu0
    %v406 = vadd.f32 %v121, %v405
    %v407 = vpop.f32.mrb[0].mxu0
    %v408 = vadd.f32 %v125, %v407
    %409 = vmatprep.mubr.bf16.mxu0 0
    %410 = vmatmul.mubr.bf16.gmra.mrb[0].mxu0 %v260
    %v411 = vpop.f32.mrb[0].mxu0
    %v412 = vadd.f32 %v121, %v411
    %v413 = vpop.f32.mrb[0].mxu0
    %v414 = vadd.f32 %v125, %v413
    %v415 = vpop.f32.mrb[0].mxu0
    %v416 = vadd.f32 %v121, %v415
    %v417 = vpop.f32.mrb[0].mxu0
    %v418 = vadd.f32 %v125, %v417
    %419 = vmatprep.mubr.bf16.mxu0 0
    %420 = vmatmul.mubr.bf16.gmra.mrb[0].mxu0 %v263
    %v421 = vpop.f32.mrb[0].mxu0
    %v422 = vadd.f32 %v121, %v421
    %v423 = vpop.f32.mrb[0].mxu0
    %v424 = vadd.f32 %v125, %v423
    %v425 = vpop.f32.mrb[0].mxu0
    %v426 = vadd.f32 %v121, %v425
    %v427 = vpop.f32.mrb[0].mxu0
    %v428 = vadd.f32 %v125, %v427
    %429 = vmatprep.mubr.bf16.mxu0 0
    %430 = vmatmul.mubr.bf16.gmra.mrb[0].mxu0 %v266
    %v431 = vpop.f32.mrb[0].mxu0
    %v432 = vadd.f32 %v121, %v431
    %v433 = vpop.f32.mrb[0].mxu0
    %v434 = vadd.f32 %v125, %v433
    %v435 = vpop.f32.mrb[0].mxu0
    %v436 = vadd.f32 %v121, %v435
    %v437 = vpop.f32.mrb[0].mxu0
    %v438 = vadd.f32 %v125, %v437
    %439 = vmatprep.mubr.bf16.mxu0 0
    %440 = vmatmul.mubr.bf16.gmra.mrb[0].mxu0 %v269
    %v441 = vpop.f32.mrb[0].mxu0
    %v442 = vadd.f32 %v121, %v441
    %v443 = vpop.f32.mrb[0].mxu0
    %v444 = vadd.f32 %v125, %v443
    %v445 = vpop.f32.mrb[0].mxu0
    %v446 = vadd.f32 %v121, %v445
    %v447 = vpop.f32.mrb[0].mxu0
    %v448 = vadd.f32 %v125, %v447
    %449 = vmatprep.mubr.bf16.mxu0 0
    %450 = vmatmul.mubr.bf16.gmra.mrb[0].mxu0 %v272
    %v451 = vpop.f32.mrb[0].mxu0
    %v452 = vadd.f32 %v121, %v451
    %v453 = vpop.f32.mrb[0].mxu0
    %v454 = vadd.f32 %v125, %v453
    %v455 = vpop.f32.mrb[0].mxu0
    %v456 = vadd.f32 %v121, %v455
    %v457 = vpop.f32.mrb[0].mxu0
    %v458 = vadd.f32 %v125, %v457
    %459 = vmatprep.mubr.bf16.mxu0 0
    %460 = vmatmul.mubr.bf16.gmra.mrb[0].mxu0 %v275
    %v461 = vpop.f32.mrb[0].mxu0
    %v462 = vadd.f32 %v121, %v461
    %v463 = vpop.f32.mrb[0].mxu0
    %v464 = vadd.f32 %v125, %v463
    %v465 = vpop.f32.mrb[0].mxu0
    %v466 = vadd.f32 %v121, %v465
    %v467 = vpop.f32.mrb[0].mxu0
    %v468 = vadd.f32 %v125, %v467
    %469 = vdwg.mxu0
    %v470 = vpack.c.bf16 %v316, %v312
    %v471 = vpack.c.bf16 %v318, %v314
    %v472 = vpack.c.bf16 %v326, %v322
    %v473 = vpack.c.bf16 %v328, %v324
    %v474 = vpack.c.bf16 %v336, %v332
    %v475 = vpack.c.bf16 %v338, %v334
    %v476 = vpack.c.bf16 %v346, %v342
    %v477 = vpack.c.bf16 %v348, %v344
    %v478 = vpack.c.bf16 %v356, %v352
    %v479 = vpack.c.bf16 %v358, %v354
    %v480 = vpack.c.bf16 %v366, %v362
    %v481 = vpack.c.bf16 %v368, %v364
    %v482 = vpack.c.bf16 %v376, %v372
    %v483 = vpack.c.bf16 %v378, %v374
    %v484 = vpack.c.bf16 %v386, %v382
    %v485 = vpack.c.bf16 %v388, %v384
    %v486 = vpack.c.bf16 %v396, %v392
    %v487 = vpack.c.bf16 %v398, %v394
    %v488 = vpack.c.bf16 %v406, %v402
    %v489 = vpack.c.bf16 %v408, %v404
    %v490 = vpack.c.bf16 %v416, %v412
    %v491 = vpack.c.bf16 %v418, %v414
    %v492 = vpack.c.bf16 %v426, %v422
    %v493 = vpack.c.bf16 %v428, %v424
    %v494 = vpack.c.bf16 %v436, %v432
    %v495 = vpack.c.bf16 %v438, %v434
    %v496 = vpack.c.bf16 %v446, %v442
    %v497 = vpack.c.bf16 %v448, %v444
    %v498 = vpack.c.bf16 %v456, %v452
    %v499 = vpack.c.bf16 %v458, %v454
    %v500 = vpack.c.bf16 %v466, %v462
    %v501 = vpack.c.bf16 %v468, %v464
    %v502 = vmax.bf16 %v470, 0
    %v503 = vmax.bf16 %v471, 0
    %v504 = vmax.bf16 %v472, 0
    %v505 = vmax.bf16 %v473, 0
    %v506 = vmax.bf16 %v474, 0
    %v507 = vmax.bf16 %v475, 0
    %v508 = vmax.bf16 %v476, 0
    %v509 = vmax.bf16 %v477, 0
    %v510 = vmax.bf16 %v478, 0
    %v511 = vmax.bf16 %v479, 0
    %v512 = vmax.bf16 %v480, 0
    %v513 = vmax.bf16 %v481, 0
    %v514 = vmax.bf16 %v482, 0
    %v515 = vmax.bf16 %v483, 0
    %v516 = vmax.bf16 %v484, 0
    %v517 = vmax.bf16 %v485, 0
    %v518 = vmax.bf16 %v486, 0
    %v519 = vmax.bf16 %v487, 0
    %v520 = vmax.bf16 %v488, 0
    %v521 = vmax.bf16 %v489, 0
    %v522 = vmax.bf16 %v490, 0
    %v523 = vmax.bf16 %v491, 0
    %v524 = vmax.bf16 %v492, 0
    %v525 = vmax.bf16 %v493, 0
    %v526 = vmax.bf16 %v494, 0
    %v527 = vmax.bf16 %v495, 0
    %v528 = vmax.bf16 %v496, 0
    %v529 = vmax.bf16 %v497, 0
    %v530 = vmax.bf16 %v498, 0
    %v531 = vmax.bf16 %v499, 0
    %v532 = vmax.bf16 %v500, 0
    %v533 = vmax.bf16 %v501, 0
    %v534 = vld [vmem:[#allocation2] sm:$0xff]
    %v535 = vld [vmem:[#allocation2 + $0x8] sm:$0xff]
    %v536 = vld [vmem:[#allocation2 + $0x10] sm:$0xff]
    %v537 = vld [vmem:[#allocation2 + $0x18] sm:$0xff]
    %v538 = vld [vmem:[#allocation2 + $0x20] sm:$0xff]
    %v539 = vld [vmem:[#allocation2 + $0x28] sm:$0xff]
    %v540 = vld [vmem:[#allocation2 + $0x30] sm:$0xff]
    %v541 = vld [vmem:[#allocation2 + $0x38] sm:$0xff]
    %v542 = vld [vmem:[#allocation2 + $0x40] sm:$0xff]
    %v543 = vld [vmem:[#allocation2 + $0x48] sm:$0xff]
    %v544 = vld [vmem:[#allocation2 + $0x50] sm:$0xff]
    %v545 = vld [vmem:[#allocation2 + $0x58] sm:$0xff]
    %v546 = vld [vmem:[#allocation2 + $0x60] sm:$0xff]
    %v547 = vld [vmem:[#allocation2 + $0x68] sm:$0xff]
    %v548 = vld [vmem:[#allocation2 + $0x70] sm:$0xff]
    %v549 = vld [vmem:[#allocation2 + $0x78] sm:$0xff]
    %v550 = vld [vmem:[#allocation2 + $0x80] sm:$0xff]
    %v551 = vld [vmem:[#allocation2 + $0x88] sm:$0xff]
    %v552 = vld [vmem:[#allocation2 + $0x90] sm:$0xff]
    %v553 = vld [vmem:[#allocation2 + $0x98] sm:$0xff]
    %v554 = vld [vmem:[#allocation2 + $0xa0] sm:$0xff]
    %v555 = vld [vmem:[#allocation2 + $0xa8] sm:$0xff]
    %v556 = vld [vmem:[#allocation2 + $0xb0] sm:$0xff]
    %v557 = vld [vmem:[#allocation2 + $0xb8] sm:$0xff]
    %v558 = vld [vmem:[#allocation2 + $0xc0] sm:$0xff]
    %v559 = vld [vmem:[#allocation2 + $0xc8] sm:$0xff]
    %v560 = vld [vmem:[#allocation2 + $0xd0] sm:$0xff]
    %v561 = vld [vmem:[#allocation2 + $0xd8] sm:$0xff]
    %v562 = vld [vmem:[#allocation2 + $0xe0] sm:$0xff]
    %v563 = vld [vmem:[#allocation2 + $0xe8] sm:$0xff]
    %v564 = vld [vmem:[#allocation2 + $0xf0] sm:$0xff]
    %v565 = vld [vmem:[#allocation2 + $0xf8] sm:$0xff]
    %v566 = vld [vmem:[%s4] sm:$0x3]
    %v568 = vlaneseq
    %v569 = vshrl.u32 %v568, 7
    %v570 = vsub.s32 0, %v569
    %v571 = vrot.slane %v566, %v570
    %v572 = vlaneseq
    %v573 = vshrl.u32 %v572, 7
    %v574 = vsub.s32 1, %v573
    %v575 = vrot.slane %v566, %v574
    %v610 = vunpack.c.l.b16 %v534
    %v611 = vunpack.c.h.b16 %v534
    %v612 = vunpack.c.l.b16 %v535
    %v613 = vunpack.c.h.b16 %v535
    %v614 = vunpack.c.l.b16 %v536
    %v615 = vunpack.c.h.b16 %v536
    %v616 = vunpack.c.l.b16 %v537
    %v617 = vunpack.c.h.b16 %v537
    %v618 = vunpack.c.l.b16 %v538
    %v619 = vunpack.c.h.b16 %v538
    %v620 = vunpack.c.l.b16 %v539
    %v621 = vunpack.c.h.b16 %v539
    %v622 = vunpack.c.l.b16 %v540
    %v623 = vunpack.c.h.b16 %v540
    %v624 = vunpack.c.l.b16 %v541
    %v625 = vunpack.c.h.b16 %v541
    %v626 = vunpack.c.l.b16 %v542
    %v627 = vunpack.c.h.b16 %v542
    %v628 = vunpack.c.l.b16 %v543
    %v629 = vunpack.c.h.b16 %v543
    %v630 = vunpack.c.l.b16 %v544
    %v631 = vunpack.c.h.b16 %v544
    %v632 = vunpack.c.l.b16 %v545
    %v633 = vunpack.c.h.b16 %v545
    %v634 = vunpack.c.l.b16 %v546
    %v635 = vunpack.c.h.b16 %v546
    %v636 = vunpack.c.l.b16 %v547
    %v637 = vunpack.c.h.b16 %v547
    %v638 = vunpack.c.l.b16 %v548
    %v639 = vunpack.c.h.b16 %v548
    %v640 = vunpack.c.l.b16 %v549
    %v641 = vunpack.c.h.b16 %v549
    %v642 = vunpack.c.l.b16 %v550
    %v643 = vunpack.c.h.b16 %v550
    %v644 = vunpack.c.l.b16 %v551
    %v645 = vunpack.c.h.b16 %v551
    %v646 = vunpack.c.l.b16 %v552
    %v647 = vunpack.c.h.b16 %v552
    %v648 = vunpack.c.l.b16 %v553
    %v649 = vunpack.c.h.b16 %v553
    %v650 = vunpack.c.l.b16 %v554
    %v651 = vunpack.c.h.b16 %v554
    %v652 = vunpack.c.l.b16 %v555
    %v653 = vunpack.c.h.b16 %v555
    %v654 = vunpack.c.l.b16 %v556
    %v655 = vunpack.c.h.b16 %v556
    %v656 = vunpack.c.l.b16 %v557
    %v657 = vunpack.c.h.b16 %v557
    %v658 = vunpack.c.l.b16 %v558
    %v659 = vunpack.c.h.b16 %v558
    %v660 = vunpack.c.l.b16 %v559
    %v661 = vunpack.c.h.b16 %v559
    %v662 = vunpack.c.l.b16 %v560
    %v663 = vunpack.c.h.b16 %v560
    %v664 = vunpack.c.l.b16 %v561
    %v665 = vunpack.c.h.b16 %v561
    %v666 = vunpack.c.l.b16 %v562
    %v667 = vunpack.c.h.b16 %v562
    %v668 = vunpack.c.l.b16 %v563
    %v669 = vunpack.c.h.b16 %v563
    %v670 = vunpack.c.l.b16 %v564
    %v671 = vunpack.c.h.b16 %v564
    %v672 = vunpack.c.l.b16 %v565
    %v673 = vunpack.c.h.b16 %v565
    %v674 = vpack.c.b16 %v612, %v610
    %v675 = vpack.c.b16 %v613, %v611
    %v676 = vpack.c.b16 %v616, %v614
    %v677 = vpack.c.b16 %v617, %v615
    %v678 = vpack.c.b16 %v620, %v618
    %v679 = vpack.c.b16 %v621, %v619
    %v680 = vpack.c.b16 %v624, %v622
    %v681 = vpack.c.b16 %v625, %v623
    %v682 = vpack.c.b16 %v628, %v626
    %v683 = vpack.c.b16 %v629, %v627
    %v684 = vpack.c.b16 %v632, %v630
    %v685 = vpack.c.b16 %v633, %v631
    %v686 = vpack.c.b16 %v636, %v634
    %v687 = vpack.c.b16 %v637, %v635
    %v688 = vpack.c.b16 %v640, %v638
    %v689 = vpack.c.b16 %v641, %v639
    %v690 = vpack.c.b16 %v644, %v642
    %v691 = vpack.c.b16 %v645, %v643
    %v692 = vpack.c.b16 %v648, %v646
    %v693 = vpack.c.b16 %v649, %v647
    %v694 = vpack.c.b16 %v652, %v650
    %v695 = vpack.c.b16 %v653, %v651
    %v696 = vpack.c.b16 %v656, %v654
    %v697 = vpack.c.b16 %v657, %v655
    %v698 = vpack.c.b16 %v660, %v658
    %v699 = vpack.c.b16 %v661, %v659
    %v700 = vpack.c.b16 %v664, %v662
    %v701 = vpack.c.b16 %v665, %v663
    %v702 = vpack.c.b16 %v668, %v666
    %v703 = vpack.c.b16 %v669, %v667
    %v704 = vpack.c.b16 %v672, %v670
    %v705 = vpack.c.b16 %v673, %v671
    %738 = vmatprep.subr.bf16.mxu0 %v675
    %739 = vmatpush1.bf16.msra.mxu0 %v674
    %740 = vmatprep.subr.bf16.mxu0 %v677
    %741 = vmatpush1.bf16.msra.mxu0 %v676
    %742 = vmatprep.subr.bf16.mxu0 %v679
    %743 = vmatpush1.bf16.msra.mxu0 %v678
    %744 = vmatprep.subr.bf16.mxu0 %v681
    %745 = vmatpush1.bf16.msra.mxu0 %v680
    %746 = vmatprep.subr.bf16.mxu0 %v683
    %747 = vmatpush1.bf16.msra.mxu0 %v682
    %748 = vmatprep.subr.bf16.mxu0 %v685
    %749 = vmatpush1.bf16.msra.mxu0 %v684
    %750 = vmatprep.subr.bf16.mxu0 %v687
    %751 = vmatpush1.bf16.msra.mxu0 %v686
    %752 = vmatprep.subr.bf16.mxu0 %v689
    %753 = vmatpush1.bf16.msra.mxu0 %v688
    %754 = vmatprep.subr.bf16.mxu0 %v691
    %755 = vmatpush1.bf16.msra.mxu0 %v690
    %756 = vmatprep.subr.bf16.mxu0 %v693
    %757 = vmatpush1.bf16.msra.mxu0 %v692
    %758 = vmatprep.subr.bf16.mxu0 %v695
    %759 = vmatpush1.bf16.msra.mxu0 %v694
    %760 = vmatprep.subr.bf16.mxu0 %v697
    %761 = vmatpush1.bf16.msra.mxu0 %v696
    %762 = vmatprep.subr.bf16.mxu0 %v699
    %763 = vmatpush1.bf16.msra.mxu0 %v698
    %764 = vmatprep.subr.bf16.mxu0 %v701
    %765 = vmatpush1.bf16.msra.mxu0 %v700
    %766 = vmatprep.subr.bf16.mxu0 %v703
    %767 = vmatpush1.bf16.msra.mxu0 %v702
    %768 = vmatprep.subr.bf16.mxu0 %v705
    %769 = vmatpush1.bf16.msra.mxu0 %v704
    %770 = vmatprep.mubr.bf16.mxu0 %v503
    %771 = vmatmul.mubr.bf16.gmra.mrb[0].mxu0 %v502
    %v772 = vpop.f32.mrb[0].mxu0
    %v773 = vadd.f32 %v571, %v772
    %v774 = vpop.f32.mrb[0].mxu0
    %v775 = vadd.f32 %v575, %v774
    %v776 = vpop.f32.mrb[0].mxu0
    %v777 = vadd.f32 %v571, %v776
    %v778 = vpop.f32.mrb[0].mxu0
    %v779 = vadd.f32 %v575, %v778
    %780 = vmatprep.mubr.bf16.mxu0 %v505
    %781 = vmatmul.mubr.bf16.gmra.mrb[0].mxu0 %v504
    %v782 = vpop.f32.mrb[0].mxu0
    %v783 = vadd.f32 %v571, %v782
    %v784 = vpop.f32.mrb[0].mxu0
    %v785 = vadd.f32 %v575, %v784
    %v786 = vpop.f32.mrb[0].mxu0
    %v787 = vadd.f32 %v571, %v786
    %v788 = vpop.f32.mrb[0].mxu0
    %v789 = vadd.f32 %v575, %v788
    %790 = vmatprep.mubr.bf16.mxu0 %v507
    %791 = vmatmul.mubr.bf16.gmra.mrb[0].mxu0 %v506
    %v792 = vpop.f32.mrb[0].mxu0
    %v793 = vadd.f32 %v571, %v792
    %v794 = vpop.f32.mrb[0].mxu0
    %v795 = vadd.f32 %v575, %v794
    %v796 = vpop.f32.mrb[0].mxu0
    %v797 = vadd.f32 %v571, %v796
    %v798 = vpop.f32.mrb[0].mxu0
    %v799 = vadd.f32 %v575, %v798
    %800 = vmatprep.mubr.bf16.mxu0 %v509
    %801 = vmatmul.mubr.bf16.gmra.mrb[0].mxu0 %v508
    %v802 = vpop.f32.mrb[0].mxu0
    %v803 = vadd.f32 %v571, %v802
    %v804 = vpop.f32.mrb[0].mxu0
    %v805 = vadd.f32 %v575, %v804
    %v806 = vpop.f32.mrb[0].mxu0
    %v807 = vadd.f32 %v571, %v806
    %v808 = vpop.f32.mrb[0].mxu0
    %v809 = vadd.f32 %v575, %v808
    %810 = vmatprep.mubr.bf16.mxu0 %v511
    %811 = vmatmul.mubr.bf16.gmra.mrb[0].mxu0 %v510
    %v812 = vpop.f32.mrb[0].mxu0
    %v813 = vadd.f32 %v571, %v812
    %v814 = vpop.f32.mrb[0].mxu0
    %v815 = vadd.f32 %v575, %v814
    %v816 = vpop.f32.mrb[0].mxu0
    %v817 = vadd.f32 %v571, %v816
    %v818 = vpop.f32.mrb[0].mxu0
    %v819 = vadd.f32 %v575, %v818
    %820 = vmatprep.mubr.bf16.mxu0 %v513
    %821 = vmatmul.mubr.bf16.gmra.mrb[0].mxu0 %v512
    %v822 = vpop.f32.mrb[0].mxu0
    %v823 = vadd.f32 %v571, %v822
    %v824 = vpop.f32.mrb[0].mxu0
    %v825 = vadd.f32 %v575, %v824
    %v826 = vpop.f32.mrb[0].mxu0
    %v827 = vadd.f32 %v571, %v826
    %v828 = vpop.f32.mrb[0].mxu0
    %v829 = vadd.f32 %v575, %v828
    %830 = vmatprep.mubr.bf16.mxu0 %v515
    %831 = vmatmul.mubr.bf16.gmra.mrb[0].mxu0 %v514
    %v832 = vpop.f32.mrb[0].mxu0
    %v833 = vadd.f32 %v571, %v832
    %v834 = vpop.f32.mrb[0].mxu0
    %v835 = vadd.f32 %v575, %v834
    %v836 = vpop.f32.mrb[0].mxu0
    %v837 = vadd.f32 %v571, %v836
    %v838 = vpop.f32.mrb[0].mxu0
    %v839 = vadd.f32 %v575, %v838
    %840 = vmatprep.mubr.bf16.mxu0 %v517
    %841 = vmatmul.mubr.bf16.gmra.mrb[0].mxu0 %v516
    %v842 = vpop.f32.mrb[0].mxu0
    %v843 = vadd.f32 %v571, %v842
    %v844 = vpop.f32.mrb[0].mxu0
    %v845 = vadd.f32 %v575, %v844
    %v846 = vpop.f32.mrb[0].mxu0
    %v847 = vadd.f32 %v571, %v846
    %v848 = vpop.f32.mrb[0].mxu0
    %v849 = vadd.f32 %v575, %v848
    %850 = vmatprep.mubr.bf16.mxu0 %v519
    %851 = vmatmul.mubr.bf16.gmra.mrb[0].mxu0 %v518
    %v852 = vpop.f32.mrb[0].mxu0
    %v853 = vadd.f32 %v571, %v852
    %v854 = vpop.f32.mrb[0].mxu0
    %v855 = vadd.f32 %v575, %v854
    %v856 = vpop.f32.mrb[0].mxu0
    %v857 = vadd.f32 %v571, %v856
    %v858 = vpop.f32.mrb[0].mxu0
    %v859 = vadd.f32 %v575, %v858
    %860 = vmatprep.mubr.bf16.mxu0 %v521
    %861 = vmatmul.mubr.bf16.gmra.mrb[0].mxu0 %v520
    %v862 = vpop.f32.mrb[0].mxu0
    %v863 = vadd.f32 %v571, %v862
    %v864 = vpop.f32.mrb[0].mxu0
    %v865 = vadd.f32 %v575, %v864
    %v866 = vpop.f32.mrb[0].mxu0
    %v867 = vadd.f32 %v571, %v866
    %v868 = vpop.f32.mrb[0].mxu0
    %v869 = vadd.f32 %v575, %v868
    %870 = vmatprep.mubr.bf16.mxu0 %v523
    %871 = vmatmul.mubr.bf16.gmra.mrb[0].mxu0 %v522
    %v872 = vpop.f32.mrb[0].mxu0
    %v873 = vadd.f32 %v571, %v872
    %v874 = vpop.f32.mrb[0].mxu0
    %v875 = vadd.f32 %v575, %v874
    %v876 = vpop.f32.mrb[0].mxu0
    %v877 = vadd.f32 %v571, %v876
    %v878 = vpop.f32.mrb[0].mxu0
    %v879 = vadd.f32 %v575, %v878
    %880 = vmatprep.mubr.bf16.mxu0 %v525
    %881 = vmatmul.mubr.bf16.gmra.mrb[0].mxu0 %v524
    %v882 = vpop.f32.mrb[0].mxu0
    %v883 = vadd.f32 %v571, %v882
    %v884 = vpop.f32.mrb[0].mxu0
    %v885 = vadd.f32 %v575, %v884
    %v886 = vpop.f32.mrb[0].mxu0
    %v887 = vadd.f32 %v571, %v886
    %v888 = vpop.f32.mrb[0].mxu0
    %v889 = vadd.f32 %v575, %v888
    %890 = vmatprep.mubr.bf16.mxu0 %v527
    %891 = vmatmul.mubr.bf16.gmra.mrb[0].mxu0 %v526
    %v892 = vpop.f32.mrb[0].mxu0
    %v893 = vadd.f32 %v571, %v892
    %v894 = vpop.f32.mrb[0].mxu0
    %v895 = vadd.f32 %v575, %v894
    %v896 = vpop.f32.mrb[0].mxu0
    %v897 = vadd.f32 %v571, %v896
    %v898 = vpop.f32.mrb[0].mxu0
    %v899 = vadd.f32 %v575, %v898
    %900 = vmatprep.mubr.bf16.mxu0 %v529
    %901 = vmatmul.mubr.bf16.gmra.mrb[0].mxu0 %v528
    %v902 = vpop.f32.mrb[0].mxu0
    %v903 = vadd.f32 %v571, %v902
    %v904 = vpop.f32.mrb[0].mxu0
    %v905 = vadd.f32 %v575, %v904
    %v906 = vpop.f32.mrb[0].mxu0
    %v907 = vadd.f32 %v571, %v906
    %v908 = vpop.f32.mrb[0].mxu0
    %v909 = vadd.f32 %v575, %v908
    %910 = vmatprep.mubr.bf16.mxu0 %v531
    %911 = vmatmul.mubr.bf16.gmra.mrb[0].mxu0 %v530
    %v912 = vpop.f32.mrb[0].mxu0
    %v913 = vadd.f32 %v571, %v912
    %v914 = vpop.f32.mrb[0].mxu0
    %v915 = vadd.f32 %v575, %v914
    %v916 = vpop.f32.mrb[0].mxu0
    %v917 = vadd.f32 %v571, %v916
    %v918 = vpop.f32.mrb[0].mxu0
    %v919 = vadd.f32 %v575, %v918
    %920 = vmatprep.mubr.bf16.mxu0 %v533
    %921 = vmatmul.mubr.bf16.gmra.mrb[0].mxu0 %v532
    %v922 = vpop.f32.mrb[0].mxu0
    %v923 = vadd.f32 %v571, %v922
    %v924 = vpop.f32.mrb[0].mxu0
    %v925 = vadd.f32 %v575, %v924
    %v926 = vpop.f32.mrb[0].mxu0
    %v927 = vadd.f32 %v571, %v926
    %v928 = vpop.f32.mrb[0].mxu0
    %v929 = vadd.f32 %v575, %v928
    %930 = vdwg.mxu0
    %v931 = vpack.c.bf16 %v777, %v773
    %v932 = vpack.c.bf16 %v779, %v775
    %v933 = vpack.c.bf16 %v787, %v783
    %v934 = vpack.c.bf16 %v789, %v785
    %v935 = vpack.c.bf16 %v797, %v793
    %v936 = vpack.c.bf16 %v799, %v795
    %v937 = vpack.c.bf16 %v807, %v803
    %v938 = vpack.c.bf16 %v809, %v805
    %v939 = vpack.c.bf16 %v817, %v813
    %v940 = vpack.c.bf16 %v819, %v815
    %v941 = vpack.c.bf16 %v827, %v823
    %v942 = vpack.c.bf16 %v829, %v825
    %v943 = vpack.c.bf16 %v837, %v833
    %v944 = vpack.c.bf16 %v839, %v835
    %v945 = vpack.c.bf16 %v847, %v843
    %v946 = vpack.c.bf16 %v849, %v845
    %v947 = vpack.c.bf16 %v857, %v853
    %v948 = vpack.c.bf16 %v859, %v855
    %v949 = vpack.c.bf16 %v867, %v863
    %v950 = vpack.c.bf16 %v869, %v865
    %v951 = vpack.c.bf16 %v877, %v873
    %v952 = vpack.c.bf16 %v879, %v875
    %v953 = vpack.c.bf16 %v887, %v883
    %v954 = vpack.c.bf16 %v889, %v885
    %v955 = vpack.c.bf16 %v897, %v893
    %v956 = vpack.c.bf16 %v899, %v895
    %v957 = vpack.c.bf16 %v907, %v903
    %v958 = vpack.c.bf16 %v909, %v905
    %v959 = vpack.c.bf16 %v917, %v913
    %v960 = vpack.c.bf16 %v919, %v915
    %v961 = vpack.c.bf16 %v927, %v923
    %v962 = vpack.c.bf16 %v929, %v925
    %v963 = vmax.bf16 %v931, 0
    %v964 = vmax.bf16 %v932, 0
    %v965 = vmax.bf16 %v933, 0
    %v966 = vmax.bf16 %v934, 0
    %v967 = vmax.bf16 %v935, 0
    %v968 = vmax.bf16 %v936, 0
    %v969 = vmax.bf16 %v937, 0
    %v970 = vmax.bf16 %v938, 0
    %v971 = vmax.bf16 %v939, 0
    %v972 = vmax.bf16 %v940, 0
    %v973 = vmax.bf16 %v941, 0
    %v974 = vmax.bf16 %v942, 0
    %v975 = vmax.bf16 %v943, 0
    %v976 = vmax.bf16 %v944, 0
    %v977 = vmax.bf16 %v945, 0
    %v978 = vmax.bf16 %v946, 0
    %v979 = vmax.bf16 %v947, 0
    %v980 = vmax.bf16 %v948, 0
    %v981 = vmax.bf16 %v949, 0
    %v982 = vmax.bf16 %v950, 0
    %v983 = vmax.bf16 %v951, 0
    %v984 = vmax.bf16 %v952, 0
    %v985 = vmax.bf16 %v953, 0
    %v986 = vmax.bf16 %v954, 0
    %v987 = vmax.bf16 %v955, 0
    %v988 = vmax.bf16 %v956, 0
    %v989 = vmax.bf16 %v957, 0
    %v990 = vmax.bf16 %v958, 0
    %v991 = vmax.bf16 %v959, 0
    %v992 = vmax.bf16 %v960, 0
    %v993 = vmax.bf16 %v961, 0
    %v994 = vmax.bf16 %v962, 0
    %v995 = vld [vmem:[#allocation4] sm:$0xff]
    %v996 = vld [vmem:[#allocation4 + $0x8] sm:$0xff]
    %v997 = vld [vmem:[#allocation4 + $0x10] sm:$0xff]
    %v998 = vld [vmem:[#allocation4 + $0x18] sm:$0xff]
    %v999 = vld [vmem:[#allocation4 + $0x20] sm:$0xff]
    %v1000 = vld [vmem:[#allocation4 + $0x28] sm:$0xff]
    %v1001 = vld [vmem:[#allocation4 + $0x30] sm:$0xff]
    %v1002 = vld [vmem:[#allocation4 + $0x38] sm:$0xff]
    %v1003 = vld [vmem:[#allocation4 + $0x40] sm:$0xff]
    %v1004 = vld [vmem:[#allocation4 + $0x48] sm:$0xff]
    %v1005 = vld [vmem:[#allocation4 + $0x50] sm:$0xff]
    %v1006 = vld [vmem:[#allocation4 + $0x58] sm:$0xff]
    %v1007 = vld [vmem:[#allocation4 + $0x60] sm:$0xff]
    %v1008 = vld [vmem:[#allocation4 + $0x68] sm:$0xff]
    %v1009 = vld [vmem:[#allocation4 + $0x70] sm:$0xff]
    %v1010 = vld [vmem:[#allocation4 + $0x78] sm:$0xff]
    %v1011 = vld [vmem:[#allocation4 + $0x80] sm:$0xff]
    %v1012 = vld [vmem:[#allocation4 + $0x88] sm:$0xff]
    %v1013 = vld [vmem:[#allocation4 + $0x90] sm:$0xff]
    %v1014 = vld [vmem:[#allocation4 + $0x98] sm:$0xff]
    %v1015 = vld [vmem:[#allocation4 + $0xa0] sm:$0xff]
    %v1016 = vld [vmem:[#allocation4 + $0xa8] sm:$0xff]
    %v1017 = vld [vmem:[#allocation4 + $0xb0] sm:$0xff]
    %v1018 = vld [vmem:[#allocation4 + $0xb8] sm:$0xff]
    %v1019 = vld [vmem:[#allocation4 + $0xc0] sm:$0xff]
    %v1020 = vld [vmem:[#allocation4 + $0xc8] sm:$0xff]
    %v1021 = vld [vmem:[#allocation4 + $0xd0] sm:$0xff]
    %v1022 = vld [vmem:[#allocation4 + $0xd8] sm:$0xff]
    %v1023 = vld [vmem:[#allocation4 + $0xe0] sm:$0xff]
    %v1024 = vld [vmem:[#allocation4 + $0xe8] sm:$0xff]
    %v1025 = vld [vmem:[#allocation4 + $0xf0] sm:$0xff]
    %v1026 = vld [vmem:[#allocation4 + $0xf8] sm:$0xff]
    %v1027 = vld [vmem:[%s6] sm:$0x3]
    %v1029 = vlaneseq
    %v1030 = vshrl.u32 %v1029, 7
    %v1031 = vsub.s32 0, %v1030
    %v1032 = vrot.slane %v1027, %v1031
    %v1033 = vlaneseq
    %v1034 = vshrl.u32 %v1033, 7
    %v1035 = vsub.s32 1, %v1034
    %v1036 = vrot.slane %v1027, %v1035
    %v1071 = vunpack.c.l.b16 %v995
    %v1072 = vunpack.c.h.b16 %v995
    %v1073 = vunpack.c.l.b16 %v996
    %v1074 = vunpack.c.h.b16 %v996
    %v1075 = vunpack.c.l.b16 %v997
    %v1076 = vunpack.c.h.b16 %v997
    %v1077 = vunpack.c.l.b16 %v998
    %v1078 = vunpack.c.h.b16 %v998
    %v1079 = vunpack.c.l.b16 %v999
    %v1080 = vunpack.c.h.b16 %v999
    %v1081 = vunpack.c.l.b16 %v1000
    %v1082 = vunpack.c.h.b16 %v1000
    %v1083 = vunpack.c.l.b16 %v1001
    %v1084 = vunpack.c.h.b16 %v1001
    %v1085 = vunpack.c.l.b16 %v1002
    %v1086 = vunpack.c.h.b16 %v1002
    %v1087 = vunpack.c.l.b16 %v1003
    %v1088 = vunpack.c.h.b16 %v1003
    %v1089 = vunpack.c.l.b16 %v1004
    %v1090 = vunpack.c.h.b16 %v1004
    %v1091 = vunpack.c.l.b16 %v1005
    %v1092 = vunpack.c.h.b16 %v1005
    %v1093 = vunpack.c.l.b16 %v1006
    %v1094 = vunpack.c.h.b16 %v1006
    %v1095 = vunpack.c.l.b16 %v1007
    %v1096 = vunpack.c.h.b16 %v1007
    %v1097 = vunpack.c.l.b16 %v1008
    %v1098 = vunpack.c.h.b16 %v1008
    %v1099 = vunpack.c.l.b16 %v1009
    %v1100 = vunpack.c.h.b16 %v1009
    %v1101 = vunpack.c.l.b16 %v1010
    %v1102 = vunpack.c.h.b16 %v1010
    %v1103 = vunpack.c.l.b16 %v1011
    %v1104 = vunpack.c.h.b16 %v1011
    %v1105 = vunpack.c.l.b16 %v1012
    %v1106 = vunpack.c.h.b16 %v1012
    %v1107 = vunpack.c.l.b16 %v1013
    %v1108 = vunpack.c.h.b16 %v1013
    %v1109 = vunpack.c.l.b16 %v1014
    %v1110 = vunpack.c.h.b16 %v1014
    %v1111 = vunpack.c.l.b16 %v1015
    %v1112 = vunpack.c.h.b16 %v1015
    %v1113 = vunpack.c.l.b16 %v1016
    %v1114 = vunpack.c.h.b16 %v1016
    %v1115 = vunpack.c.l.b16 %v1017
    %v1116 = vunpack.c.h.b16 %v1017
    %v1117 = vunpack.c.l.b16 %v1018
    %v1118 = vunpack.c.h.b16 %v1018
    %v1119 = vunpack.c.l.b16 %v1019
    %v1120 = vunpack.c.h.b16 %v1019
    %v1121 = vunpack.c.l.b16 %v1020
    %v1122 = vunpack.c.h.b16 %v1020
    %v1123 = vunpack.c.l.b16 %v1021
    %v1124 = vunpack.c.h.b16 %v1021
    %v1125 = vunpack.c.l.b16 %v1022
    %v1126 = vunpack.c.h.b16 %v1022
    %v1127 = vunpack.c.l.b16 %v1023
    %v1128 = vunpack.c.h.b16 %v1023
    %v1129 = vunpack.c.l.b16 %v1024
    %v1130 = vunpack.c.h.b16 %v1024
    %v1131 = vunpack.c.l.b16 %v1025
    %v1132 = vunpack.c.h.b16 %v1025
    %v1133 = vunpack.c.l.b16 %v1026
    %v1134 = vunpack.c.h.b16 %v1026
    %v1135 = vpack.c.b16 %v1073, %v1071
    %v1136 = vpack.c.b16 %v1074, %v1072
    %v1137 = vpack.c.b16 %v1077, %v1075
    %v1138 = vpack.c.b16 %v1078, %v1076
    %v1139 = vpack.c.b16 %v1081, %v1079
    %v1140 = vpack.c.b16 %v1082, %v1080
    %v1141 = vpack.c.b16 %v1085, %v1083
    %v1142 = vpack.c.b16 %v1086, %v1084
    %v1143 = vpack.c.b16 %v1089, %v1087
    %v1144 = vpack.c.b16 %v1090, %v1088
    %v1145 = vpack.c.b16 %v1093, %v1091
    %v1146 = vpack.c.b16 %v1094, %v1092
    %v1147 = vpack.c.b16 %v1097, %v1095
    %v1148 = vpack.c.b16 %v1098, %v1096
    %v1149 = vpack.c.b16 %v1101, %v1099
    %v1150 = vpack.c.b16 %v1102, %v1100
    %v1151 = vpack.c.b16 %v1105, %v1103
    %v1152 = vpack.c.b16 %v1106, %v1104
    %v1153 = vpack.c.b16 %v1109, %v1107
    %v1154 = vpack.c.b16 %v1110, %v1108
    %v1155 = vpack.c.b16 %v1113, %v1111
    %v1156 = vpack.c.b16 %v1114, %v1112
    %v1157 = vpack.c.b16 %v1117, %v1115
    %v1158 = vpack.c.b16 %v1118, %v1116
    %v1159 = vpack.c.b16 %v1121, %v1119
    %v1160 = vpack.c.b16 %v1122, %v1120
    %v1161 = vpack.c.b16 %v1125, %v1123
    %v1162 = vpack.c.b16 %v1126, %v1124
    %v1163 = vpack.c.b16 %v1129, %v1127
    %v1164 = vpack.c.b16 %v1130, %v1128
    %v1165 = vpack.c.b16 %v1133, %v1131
    %v1166 = vpack.c.b16 %v1134, %v1132
    %1199 = vmatprep.subr.bf16.mxu0 %v1136
    %1200 = vmatpush1.bf16.msra.mxu0 %v1135
    %1201 = vmatprep.subr.bf16.mxu0 %v1138
    %1202 = vmatpush1.bf16.msra.mxu0 %v1137
    %1203 = vmatprep.subr.bf16.mxu0 %v1140
    %1204 = vmatpush1.bf16.msra.mxu0 %v1139
    %1205 = vmatprep.subr.bf16.mxu0 %v1142
    %1206 = vmatpush1.bf16.msra.mxu0 %v1141
    %1207 = vmatprep.subr.bf16.mxu0 %v1144
    %1208 = vmatpush1.bf16.msra.mxu0 %v1143
    %1209 = vmatprep.subr.bf16.mxu0 %v1146
    %1210 = vmatpush1.bf16.msra.mxu0 %v1145
    %1211 = vmatprep.subr.bf16.mxu0 %v1148
    %1212 = vmatpush1.bf16.msra.mxu0 %v1147
    %1213 = vmatprep.subr.bf16.mxu0 %v1150
    %1214 = vmatpush1.bf16.msra.mxu0 %v1149
    %1215 = vmatprep.subr.bf16.mxu0 %v1152
    %1216 = vmatpush1.bf16.msra.mxu0 %v1151
    %1217 = vmatprep.subr.bf16.mxu0 %v1154
    %1218 = vmatpush1.bf16.msra.mxu0 %v1153
    %1219 = vmatprep.subr.bf16.mxu0 %v1156
    %1220 = vmatpush1.bf16.msra.mxu0 %v1155
    %1221 = vmatprep.subr.bf16.mxu0 %v1158
    %1222 = vmatpush1.bf16.msra.mxu0 %v1157
    %1223 = vmatprep.subr.bf16.mxu0 %v1160
    %1224 = vmatpush1.bf16.msra.mxu0 %v1159
    %1225 = vmatprep.subr.bf16.mxu0 %v1162
    %1226 = vmatpush1.bf16.msra.mxu0 %v1161
    %1227 = vmatprep.subr.bf16.mxu0 %v1164
    %1228 = vmatpush1.bf16.msra.mxu0 %v1163
    %1229 = vmatprep.subr.bf16.mxu0 %v1166
    %1230 = vmatpush1.bf16.msra.mxu0 %v1165
    %1231 = vmatprep.mubr.bf16.mxu0 %v964
    %1232 = vmatmul.mubr.bf16.gmra.mrb[0].mxu0 %v963
    %v1233 = vpop.f32.mrb[0].mxu0
    %v1234 = vadd.f32 %v1032, %v1233
    %v1235 = vpop.f32.mrb[0].mxu0
    %v1236 = vadd.f32 %v1036, %v1235
    %v1237 = vpop.f32.mrb[0].mxu0
    %v1238 = vadd.f32 %v1032, %v1237
    %v1239 = vpop.f32.mrb[0].mxu0
    %v1240 = vadd.f32 %v1036, %v1239
    %1241 = vmatprep.mubr.bf16.mxu0 %v966
    %1242 = vmatmul.mubr.bf16.gmra.mrb[0].mxu0 %v965
    %v1243 = vpop.f32.mrb[0].mxu0
    %v1244 = vadd.f32 %v1032, %v1243
    %v1245 = vpop.f32.mrb[0].mxu0
    %v1246 = vadd.f32 %v1036, %v1245
    %v1247 = vpop.f32.mrb[0].mxu0
    %v1248 = vadd.f32 %v1032, %v1247
    %v1249 = vpop.f32.mrb[0].mxu0
    %v1250 = vadd.f32 %v1036, %v1249
    %1251 = vmatprep.mubr.bf16.mxu0 %v968
    %1252 = vmatmul.mubr.bf16.gmra.mrb[0].mxu0 %v967
    %v1253 = vpop.f32.mrb[0].mxu0
    %v1254 = vadd.f32 %v1032, %v1253
    %v1255 = vpop.f32.mrb[0].mxu0
    %v1256 = vadd.f32 %v1036, %v1255
    %v1257 = vpop.f32.mrb[0].mxu0
    %v1258 = vadd.f32 %v1032, %v1257
    %v1259 = vpop.f32.mrb[0].mxu0
    %v1260 = vadd.f32 %v1036, %v1259
    %1261 = vmatprep.mubr.bf16.mxu0 %v970
    %1262 = vmatmul.mubr.bf16.gmra.mrb[0].mxu0 %v969
    %v1263 = vpop.f32.mrb[0].mxu0
    %v1264 = vadd.f32 %v1032, %v1263
    %v1265 = vpop.f32.mrb[0].mxu0
    %v1266 = vadd.f32 %v1036, %v1265
    %v1267 = vpop.f32.mrb[0].mxu0
    %v1268 = vadd.f32 %v1032, %v1267
    %v1269 = vpop.f32.mrb[0].mxu0
    %v1270 = vadd.f32 %v1036, %v1269
    %1271 = vmatprep.mubr.bf16.mxu0 %v972
    %1272 = vmatmul.mubr.bf16.gmra.mrb[0].mxu0 %v971
    %v1273 = vpop.f32.mrb[0].mxu0
    %v1274 = vadd.f32 %v1032, %v1273
    %v1275 = vpop.f32.mrb[0].mxu0
    %v1276 = vadd.f32 %v1036, %v1275
    %v1277 = vpop.f32.mrb[0].mxu0
    %v1278 = vadd.f32 %v1032, %v1277
    %v1279 = vpop.f32.mrb[0].mxu0
    %v1280 = vadd.f32 %v1036, %v1279
    %1281 = vmatprep.mubr.bf16.mxu0 %v974
    %1282 = vmatmul.mubr.bf16.gmra.mrb[0].mxu0 %v973
    %v1283 = vpop.f32.mrb[0].mxu0
    %v1284 = vadd.f32 %v1032, %v1283
    %v1285 = vpop.f32.mrb[0].mxu0
    %v1286 = vadd.f32 %v1036, %v1285
    %v1287 = vpop.f32.mrb[0].mxu0
    %v1288 = vadd.f32 %v1032, %v1287
    %v1289 = vpop.f32.mrb[0].mxu0
    %v1290 = vadd.f32 %v1036, %v1289
    %1291 = vmatprep.mubr.bf16.mxu0 %v976
    %1292 = vmatmul.mubr.bf16.gmra.mrb[0].mxu0 %v975
    %v1293 = vpop.f32.mrb[0].mxu0
    %v1294 = vadd.f32 %v1032, %v1293
    %v1295 = vpop.f32.mrb[0].mxu0
    %v1296 = vadd.f32 %v1036, %v1295
    %v1297 = vpop.f32.mrb[0].mxu0
    %v1298 = vadd.f32 %v1032, %v1297
    %v1299 = vpop.f32.mrb[0].mxu0
    %v1300 = vadd.f32 %v1036, %v1299
    %1301 = vmatprep.mubr.bf16.mxu0 %v978
    %1302 = vmatmul.mubr.bf16.gmra.mrb[0].mxu0 %v977
    %v1303 = vpop.f32.mrb[0].mxu0
    %v1304 = vadd.f32 %v1032, %v1303
    %v1305 = vpop.f32.mrb[0].mxu0
    %v1306 = vadd.f32 %v1036, %v1305
    %v1307 = vpop.f32.mrb[0].mxu0
    %v1308 = vadd.f32 %v1032, %v1307
    %v1309 = vpop.f32.mrb[0].mxu0
    %v1310 = vadd.f32 %v1036, %v1309
    %1311 = vmatprep.mubr.bf16.mxu0 %v980
    %1312 = vmatmul.mubr.bf16.gmra.mrb[0].mxu0 %v979
    %v1313 = vpop.f32.mrb[0].mxu0
    %v1314 = vadd.f32 %v1032, %v1313
    %v1315 = vpop.f32.mrb[0].mxu0
    %v1316 = vadd.f32 %v1036, %v1315
    %v1317 = vpop.f32.mrb[0].mxu0
    %v1318 = vadd.f32 %v1032, %v1317
    %v1319 = vpop.f32.mrb[0].mxu0
    %v1320 = vadd.f32 %v1036, %v1319
    %1321 = vmatprep.mubr.bf16.mxu0 %v982
    %1322 = vmatmul.mubr.bf16.gmra.mrb[0].mxu0 %v981
    %v1323 = vpop.f32.mrb[0].mxu0
    %v1324 = vadd.f32 %v1032, %v1323
    %v1325 = vpop.f32.mrb[0].mxu0
    %v1326 = vadd.f32 %v1036, %v1325
    %v1327 = vpop.f32.mrb[0].mxu0
    %v1328 = vadd.f32 %v1032, %v1327
    %v1329 = vpop.f32.mrb[0].mxu0
    %v1330 = vadd.f32 %v1036, %v1329
    %1331 = vmatprep.mubr.bf16.mxu0 %v984
    %1332 = vmatmul.mubr.bf16.gmra.mrb[0].mxu0 %v983
    %v1333 = vpop.f32.mrb[0].mxu0
    %v1334 = vadd.f32 %v1032, %v1333
    %v1335 = vpop.f32.mrb[0].mxu0
    %v1336 = vadd.f32 %v1036, %v1335
    %v1337 = vpop.f32.mrb[0].mxu0
    %v1338 = vadd.f32 %v1032, %v1337
    %v1339 = vpop.f32.mrb[0].mxu0
    %v1340 = vadd.f32 %v1036, %v1339
    %1341 = vmatprep.mubr.bf16.mxu0 %v986
    %1342 = vmatmul.mubr.bf16.gmra.mrb[0].mxu0 %v985
    %v1343 = vpop.f32.mrb[0].mxu0
    %v1344 = vadd.f32 %v1032, %v1343
    %v1345 = vpop.f32.mrb[0].mxu0
    %v1346 = vadd.f32 %v1036, %v1345
    %v1347 = vpop.f32.mrb[0].mxu0
    %v1348 = vadd.f32 %v1032, %v1347
    %v1349 = vpop.f32.mrb[0].mxu0
    %v1350 = vadd.f32 %v1036, %v1349
    %1351 = vmatprep.mubr.bf16.mxu0 %v988
    %1352 = vmatmul.mubr.bf16.gmra.mrb[0].mxu0 %v987
    %v1353 = vpop.f32.mrb[0].mxu0
    %v1354 = vadd.f32 %v1032, %v1353
    %v1355 = vpop.f32.mrb[0].mxu0
    %v1356 = vadd.f32 %v1036, %v1355
    %v1357 = vpop.f32.mrb[0].mxu0
    %v1358 = vadd.f32 %v1032, %v1357
    %v1359 = vpop.f32.mrb[0].mxu0
    %v1360 = vadd.f32 %v1036, %v1359
    %1361 = vmatprep.mubr.bf16.mxu0 %v990
    %1362 = vmatmul.mubr.bf16.gmra.mrb[0].mxu0 %v989
    %v1363 = vpop.f32.mrb[0].mxu0
    %v1364 = vadd.f32 %v1032, %v1363
    %v1365 = vpop.f32.mrb[0].mxu0
    %v1366 = vadd.f32 %v1036, %v1365
    %v1367 = vpop.f32.mrb[0].mxu0
    %v1368 = vadd.f32 %v1032, %v1367
    %v1369 = vpop.f32.mrb[0].mxu0
    %v1370 = vadd.f32 %v1036, %v1369
    %1371 = vmatprep.mubr.bf16.mxu0 %v992
    %1372 = vmatmul.mubr.bf16.gmra.mrb[0].mxu0 %v991
    %v1373 = vpop.f32.mrb[0].mxu0
    %v1374 = vadd.f32 %v1032, %v1373
    %v1375 = vpop.f32.mrb[0].mxu0
    %v1376 = vadd.f32 %v1036, %v1375
    %v1377 = vpop.f32.mrb[0].mxu0
    %v1378 = vadd.f32 %v1032, %v1377
    %v1379 = vpop.f32.mrb[0].mxu0
    %v1380 = vadd.f32 %v1036, %v1379
    %1381 = vmatprep.mubr.bf16.mxu0 %v994
    %1382 = vmatmul.mubr.bf16.gmra.mrb[0].mxu0 %v993
    %v1383 = vpop.f32.mrb[0].mxu0
    %v1384 = vadd.f32 %v1032, %v1383
    %v1385 = vpop.f32.mrb[0].mxu0
    %v1386 = vadd.f32 %v1036, %v1385
    %v1387 = vpop.f32.mrb[0].mxu0
    %v1388 = vadd.f32 %v1032, %v1387
    %v1389 = vpop.f32.mrb[0].mxu0
    %v1390 = vadd.f32 %v1036, %v1389
    %1391 = vdwg.mxu0
    %v1392 = vpack.c.bf16 %v1238, %v1234
    %v1393 = vpack.c.bf16 %v1240, %v1236
    %v1394 = vpack.c.bf16 %v1248, %v1244
    %v1395 = vpack.c.bf16 %v1250, %v1246
    %v1396 = vpack.c.bf16 %v1258, %v1254
    %v1397 = vpack.c.bf16 %v1260, %v1256
    %v1398 = vpack.c.bf16 %v1268, %v1264
    %v1399 = vpack.c.bf16 %v1270, %v1266
    %v1400 = vpack.c.bf16 %v1278, %v1274
    %v1401 = vpack.c.bf16 %v1280, %v1276
    %v1402 = vpack.c.bf16 %v1288, %v1284
    %v1403 = vpack.c.bf16 %v1290, %v1286
    %v1404 = vpack.c.bf16 %v1298, %v1294
    %v1405 = vpack.c.bf16 %v1300, %v1296
    %v1406 = vpack.c.bf16 %v1308, %v1304
    %v1407 = vpack.c.bf16 %v1310, %v1306
    %v1408 = vpack.c.bf16 %v1318, %v1314
    %v1409 = vpack.c.bf16 %v1320, %v1316
    %v1410 = vpack.c.bf16 %v1328, %v1324
    %v1411 = vpack.c.bf16 %v1330, %v1326
    %v1412 = vpack.c.bf16 %v1338, %v1334
    %v1413 = vpack.c.bf16 %v1340, %v1336
    %v1414 = vpack.c.bf16 %v1348, %v1344
    %v1415 = vpack.c.bf16 %v1350, %v1346
    %v1416 = vpack.c.bf16 %v1358, %v1354
    %v1417 = vpack.c.bf16 %v1360, %v1356
    %v1418 = vpack.c.bf16 %v1368, %v1364
    %v1419 = vpack.c.bf16 %v1370, %v1366
    %v1420 = vpack.c.bf16 %v1378, %v1374
    %v1421 = vpack.c.bf16 %v1380, %v1376
    %v1422 = vpack.c.bf16 %v1388, %v1384
    %v1423 = vpack.c.bf16 %v1390, %v1386
    %v1424 = vmax.bf16 %v1392, 0
    %v1425 = vmax.bf16 %v1393, 0
    %v1426 = vmax.bf16 %v1394, 0
    %v1427 = vmax.bf16 %v1395, 0
    %v1428 = vmax.bf16 %v1396, 0
    %v1429 = vmax.bf16 %v1397, 0
    %v1430 = vmax.bf16 %v1398, 0
    %v1431 = vmax.bf16 %v1399, 0
    %v1432 = vmax.bf16 %v1400, 0
    %v1433 = vmax.bf16 %v1401, 0
    %v1434 = vmax.bf16 %v1402, 0
    %v1435 = vmax.bf16 %v1403, 0
    %v1436 = vmax.bf16 %v1404, 0
    %v1437 = vmax.bf16 %v1405, 0
    %v1438 = vmax.bf16 %v1406, 0
    %v1439 = vmax.bf16 %v1407, 0
    %v1440 = vmax.bf16 %v1408, 0
    %v1441 = vmax.bf16 %v1409, 0
    %v1442 = vmax.bf16 %v1410, 0
    %v1443 = vmax.bf16 %v1411, 0
    %v1444 = vmax.bf16 %v1412, 0
    %v1445 = vmax.bf16 %v1413, 0
    %v1446 = vmax.bf16 %v1414, 0
    %v1447 = vmax.bf16 %v1415, 0
    %v1448 = vmax.bf16 %v1416, 0
    %v1449 = vmax.bf16 %v1417, 0
    %v1450 = vmax.bf16 %v1418, 0
    %v1451 = vmax.bf16 %v1419, 0
    %v1452 = vmax.bf16 %v1420, 0
    %v1453 = vmax.bf16 %v1421, 0
    %v1454 = vmax.bf16 %v1422, 0
    %v1455 = vmax.bf16 %v1423, 0
    %v1456 = vld [vmem:[#allocation6] sm:$0xff]
    %v1457 = vld [vmem:[#allocation6 + $0x8] sm:$0xff]
    %v1458 = vld [vmem:[#allocation6 + $0x10] sm:$0xff]
    %v1459 = vld [vmem:[#allocation6 + $0x18] sm:$0xff]
    %v1460 = vld [vmem:[#allocation6 + $0x20] sm:$0xff]
    %v1461 = vld [vmem:[#allocation6 + $0x28] sm:$0xff]
    %v1462 = vld [vmem:[#allocation6 + $0x30] sm:$0xff]
    %v1463 = vld [vmem:[#allocation6 + $0x38] sm:$0xff]
    %v1464 = vld [vmem:[#allocation6 + $0x40] sm:$0xff]
    %v1465 = vld [vmem:[#allocation6 + $0x48] sm:$0xff]
    %v1466 = vld [vmem:[#allocation6 + $0x50] sm:$0xff]
    %v1467 = vld [vmem:[#allocation6 + $0x58] sm:$0xff]
    %v1468 = vld [vmem:[#allocation6 + $0x60] sm:$0xff]
    %v1469 = vld [vmem:[#allocation6 + $0x68] sm:$0xff]
    %v1470 = vld [vmem:[#allocation6 + $0x70] sm:$0xff]
    %v1471 = vld [vmem:[#allocation6 + $0x78] sm:$0xff]
    %v1472 = vld [vmem:[#allocation6 + $0x80] sm:$0xff]
    %v1473 = vld [vmem:[#allocation6 + $0x88] sm:$0xff]
    %v1474 = vld [vmem:[#allocation6 + $0x90] sm:$0xff]
    %v1475 = vld [vmem:[#allocation6 + $0x98] sm:$0xff]
    %v1476 = vld [vmem:[#allocation6 + $0xa0] sm:$0xff]
    %v1477 = vld [vmem:[#allocation6 + $0xa8] sm:$0xff]
    %v1478 = vld [vmem:[#allocation6 + $0xb0] sm:$0xff]
    %v1479 = vld [vmem:[#allocation6 + $0xb8] sm:$0xff]
    %v1480 = vld [vmem:[#allocation6 + $0xc0] sm:$0xff]
    %v1481 = vld [vmem:[#allocation6 + $0xc8] sm:$0xff]
    %v1482 = vld [vmem:[#allocation6 + $0xd0] sm:$0xff]
    %v1483 = vld [vmem:[#allocation6 + $0xd8] sm:$0xff]
    %v1484 = vld [vmem:[#allocation6 + $0xe0] sm:$0xff]
    %v1485 = vld [vmem:[#allocation6 + $0xe8] sm:$0xff]
    %v1486 = vld [vmem:[#allocation6 + $0xf0] sm:$0xff]
    %v1487 = vld [vmem:[#allocation6 + $0xf8] sm:$0xff]
    %v1488 = vld [vmem:[%s8] sm:$0x3]
    %v1490 = vlaneseq
    %v1491 = vshrl.u32 %v1490, 7
    %v1492 = vsub.s32 0, %v1491
    %v1493 = vrot.slane %v1488, %v1492
    %v1494 = vlaneseq
    %v1495 = vshrl.u32 %v1494, 7
    %v1496 = vsub.s32 1, %v1495
    %v1497 = vrot.slane %v1488, %v1496
    %v1532 = vunpack.c.l.b16 %v1456
    %v1533 = vunpack.c.h.b16 %v1456
    %v1534 = vunpack.c.l.b16 %v1457
    %v1535 = vunpack.c.h.b16 %v1457
    %v1536 = vunpack.c.l.b16 %v1458
    %v1537 = vunpack.c.h.b16 %v1458
    %v1538 = vunpack.c.l.b16 %v1459
    %v1539 = vunpack.c.h.b16 %v1459
    %v1540 = vunpack.c.l.b16 %v1460
    %v1541 = vunpack.c.h.b16 %v1460
    %v1542 = vunpack.c.l.b16 %v1461
    %v1543 = vunpack.c.h.b16 %v1461
    %v1544 = vunpack.c.l.b16 %v1462
    %v1545 = vunpack.c.h.b16 %v1462
    %v1546 = vunpack.c.l.b16 %v1463
    %v1547 = vunpack.c.h.b16 %v1463
    %v1548 = vunpack.c.l.b16 %v1464
    %v1549 = vunpack.c.h.b16 %v1464
    %v1550 = vunpack.c.l.b16 %v1465
    %v1551 = vunpack.c.h.b16 %v1465
    %v1552 = vunpack.c.l.b16 %v1466
    %v1553 = vunpack.c.h.b16 %v1466
    %v1554 = vunpack.c.l.b16 %v1467
    %v1555 = vunpack.c.h.b16 %v1467
    %v1556 = vunpack.c.l.b16 %v1468
    %v1557 = vunpack.c.h.b16 %v1468
    %v1558 = vunpack.c.l.b16 %v1469
    %v1559 = vunpack.c.h.b16 %v1469
    %v1560 = vunpack.c.l.b16 %v1470
    %v1561 = vunpack.c.h.b16 %v1470
    %v1562 = vunpack.c.l.b16 %v1471
    %v1563 = vunpack.c.h.b16 %v1471
    %v1564 = vunpack.c.l.b16 %v1472
    %v1565 = vunpack.c.h.b16 %v1472
    %v1566 = vunpack.c.l.b16 %v1473
    %v1567 = vunpack.c.h.b16 %v1473
    %v1568 = vunpack.c.l.b16 %v1474
    %v1569 = vunpack.c.h.b16 %v1474
    %v1570 = vunpack.c.l.b16 %v1475
    %v1571 = vunpack.c.h.b16 %v1475
    %v1572 = vunpack.c.l.b16 %v1476
    %v1573 = vunpack.c.h.b16 %v1476
    %v1574 = vunpack.c.l.b16 %v1477
    %v1575 = vunpack.c.h.b16 %v1477
    %v1576 = vunpack.c.l.b16 %v1478
    %v1577 = vunpack.c.h.b16 %v1478
    %v1578 = vunpack.c.l.b16 %v1479
    %v1579 = vunpack.c.h.b16 %v1479
    %v1580 = vunpack.c.l.b16 %v1480
    %v1581 = vunpack.c.h.b16 %v1480
    %v1582 = vunpack.c.l.b16 %v1481
    %v1583 = vunpack.c.h.b16 %v1481
    %v1584 = vunpack.c.l.b16 %v1482
    %v1585 = vunpack.c.h.b16 %v1482
    %v1586 = vunpack.c.l.b16 %v1483
    %v1587 = vunpack.c.h.b16 %v1483
    %v1588 = vunpack.c.l.b16 %v1484
    %v1589 = vunpack.c.h.b16 %v1484
    %v1590 = vunpack.c.l.b16 %v1485
    %v1591 = vunpack.c.h.b16 %v1485
    %v1592 = vunpack.c.l.b16 %v1486
    %v1593 = vunpack.c.h.b16 %v1486
    %v1594 = vunpack.c.l.b16 %v1487
    %v1595 = vunpack.c.h.b16 %v1487
    %v1596 = vpack.c.b16 %v1534, %v1532
    %v1597 = vpack.c.b16 %v1535, %v1533
    %v1598 = vpack.c.b16 %v1538, %v1536
    %v1599 = vpack.c.b16 %v1539, %v1537
    %v1600 = vpack.c.b16 %v1542, %v1540
    %v1601 = vpack.c.b16 %v1543, %v1541
    %v1602 = vpack.c.b16 %v1546, %v1544
    %v1603 = vpack.c.b16 %v1547, %v1545
    %v1604 = vpack.c.b16 %v1550, %v1548
    %v1605 = vpack.c.b16 %v1551, %v1549
    %v1606 = vpack.c.b16 %v1554, %v1552
    %v1607 = vpack.c.b16 %v1555, %v1553
    %v1608 = vpack.c.b16 %v1558, %v1556
    %v1609 = vpack.c.b16 %v1559, %v1557
    %v1610 = vpack.c.b16 %v1562, %v1560
    %v1611 = vpack.c.b16 %v1563, %v1561
    %v1612 = vpack.c.b16 %v1566, %v1564
    %v1613 = vpack.c.b16 %v1567, %v1565
    %v1614 = vpack.c.b16 %v1570, %v1568
    %v1615 = vpack.c.b16 %v1571, %v1569
    %v1616 = vpack.c.b16 %v1574, %v1572
    %v1617 = vpack.c.b16 %v1575, %v1573
    %v1618 = vpack.c.b16 %v1578, %v1576
    %v1619 = vpack.c.b16 %v1579, %v1577
    %v1620 = vpack.c.b16 %v1582, %v1580
    %v1621 = vpack.c.b16 %v1583, %v1581
    %v1622 = vpack.c.b16 %v1586, %v1584
    %v1623 = vpack.c.b16 %v1587, %v1585
    %v1624 = vpack.c.b16 %v1590, %v1588
    %v1625 = vpack.c.b16 %v1591, %v1589
    %v1626 = vpack.c.b16 %v1594, %v1592
    %v1627 = vpack.c.b16 %v1595, %v1593
    %1660 = vmatprep.subr.bf16.mxu0 %v1597
    %1661 = vmatpush1.bf16.msra.mxu0 %v1596
    %1662 = vmatprep.subr.bf16.mxu0 %v1599
    %1663 = vmatpush1.bf16.msra.mxu0 %v1598
    %1664 = vmatprep.subr.bf16.mxu0 %v1601
    %1665 = vmatpush1.bf16.msra.mxu0 %v1600
    %1666 = vmatprep.subr.bf16.mxu0 %v1603
    %1667 = vmatpush1.bf16.msra.mxu0 %v1602
    %1668 = vmatprep.subr.bf16.mxu0 %v1605
    %1669 = vmatpush1.bf16.msra.mxu0 %v1604
    %1670 = vmatprep.subr.bf16.mxu0 %v1607
    %1671 = vmatpush1.bf16.msra.mxu0 %v1606
    %1672 = vmatprep.subr.bf16.mxu0 %v1609
    %1673 = vmatpush1.bf16.msra.mxu0 %v1608
    %1674 = vmatprep.subr.bf16.mxu0 %v1611
    %1675 = vmatpush1.bf16.msra.mxu0 %v1610
    %1676 = vmatprep.subr.bf16.mxu0 %v1613
    %1677 = vmatpush1.bf16.msra.mxu0 %v1612
    %1678 = vmatprep.subr.bf16.mxu0 %v1615
    %1679 = vmatpush1.bf16.msra.mxu0 %v1614
    %1680 = vmatprep.subr.bf16.mxu0 %v1617
    %1681 = vmatpush1.bf16.msra.mxu0 %v1616
    %1682 = vmatprep.subr.bf16.mxu0 %v1619
    %1683 = vmatpush1.bf16.msra.mxu0 %v1618
    %1684 = vmatprep.subr.bf16.mxu0 %v1621
    %1685 = vmatpush1.bf16.msra.mxu0 %v1620
    %1686 = vmatprep.subr.bf16.mxu0 %v1623
    %1687 = vmatpush1.bf16.msra.mxu0 %v1622
    %1688 = vmatprep.subr.bf16.mxu0 %v1625
    %1689 = vmatpush1.bf16.msra.mxu0 %v1624
    %1690 = vmatprep.subr.bf16.mxu0 %v1627
    %1691 = vmatpush1.bf16.msra.mxu0 %v1626
    %1692 = vmatprep.mubr.bf16.mxu0 %v1425
    %1693 = vmatmul.mubr.bf16.gmra.mrb[0].mxu0 %v1424
    %v1694 = vpop.f32.mrb[0].mxu0
    %v1695 = vadd.f32 %v1493, %v1694
    %v1696 = vpop.f32.mrb[0].mxu0
    %v1697 = vadd.f32 %v1497, %v1696
    %v1698 = vpop.f32.mrb[0].mxu0
    %v1699 = vadd.f32 %v1493, %v1698
    %v1700 = vpop.f32.mrb[0].mxu0
    %v1701 = vadd.f32 %v1497, %v1700
    %1702 = vmatprep.mubr.bf16.mxu0 %v1427
    %1703 = vmatmul.mubr.bf16.gmra.mrb[0].mxu0 %v1426
    %v1704 = vpop.f32.mrb[0].mxu0
    %v1705 = vadd.f32 %v1493, %v1704
    %v1706 = vpop.f32.mrb[0].mxu0
    %v1707 = vadd.f32 %v1497, %v1706
    %v1708 = vpop.f32.mrb[0].mxu0
    %v1709 = vadd.f32 %v1493, %v1708
    %v1710 = vpop.f32.mrb[0].mxu0
    %v1711 = vadd.f32 %v1497, %v1710
    %1712 = vmatprep.mubr.bf16.mxu0 %v1429
    %1713 = vmatmul.mubr.bf16.gmra.mrb[0].mxu0 %v1428
    %v1714 = vpop.f32.mrb[0].mxu0
    %v1715 = vadd.f32 %v1493, %v1714
    %v1716 = vpop.f32.mrb[0].mxu0
    %v1717 = vadd.f32 %v1497, %v1716
    %v1718 = vpop.f32.mrb[0].mxu0
    %v1719 = vadd.f32 %v1493, %v1718
    %v1720 = vpop.f32.mrb[0].mxu0
    %v1721 = vadd.f32 %v1497, %v1720
    %1722 = vmatprep.mubr.bf16.mxu0 %v1431
    %1723 = vmatmul.mubr.bf16.gmra.mrb[0].mxu0 %v1430
    %v1724 = vpop.f32.mrb[0].mxu0
    %v1725 = vadd.f32 %v1493, %v1724
    %v1726 = vpop.f32.mrb[0].mxu0
    %v1727 = vadd.f32 %v1497, %v1726
    %v1728 = vpop.f32.mrb[0].mxu0
    %v1729 = vadd.f32 %v1493, %v1728
    %v1730 = vpop.f32.mrb[0].mxu0
    %v1731 = vadd.f32 %v1497, %v1730
    %1732 = vmatprep.mubr.bf16.mxu0 %v1433
    %1733 = vmatmul.mubr.bf16.gmra.mrb[0].mxu0 %v1432
    %v1734 = vpop.f32.mrb[0].mxu0
    %v1735 = vadd.f32 %v1493, %v1734
    %v1736 = vpop.f32.mrb[0].mxu0
    %v1737 = vadd.f32 %v1497, %v1736
    %v1738 = vpop.f32.mrb[0].mxu0
    %v1739 = vadd.f32 %v1493, %v1738
    %v1740 = vpop.f32.mrb[0].mxu0
    %v1741 = vadd.f32 %v1497, %v1740
    %1742 = vmatprep.mubr.bf16.mxu0 %v1435
    %1743 = vmatmul.mubr.bf16.gmra.mrb[0].mxu0 %v1434
    %v1744 = vpop.f32.mrb[0].mxu0
    %v1745 = vadd.f32 %v1493, %v1744
    %v1746 = vpop.f32.mrb[0].mxu0
    %v1747 = vadd.f32 %v1497, %v1746
    %v1748 = vpop.f32.mrb[0].mxu0
    %v1749 = vadd.f32 %v1493, %v1748
    %v1750 = vpop.f32.mrb[0].mxu0
    %v1751 = vadd.f32 %v1497, %v1750
    %1752 = vmatprep.mubr.bf16.mxu0 %v1437
    %1753 = vmatmul.mubr.bf16.gmra.mrb[0].mxu0 %v1436
    %v1754 = vpop.f32.mrb[0].mxu0
    %v1755 = vadd.f32 %v1493, %v1754
    %v1756 = vpop.f32.mrb[0].mxu0
    %v1757 = vadd.f32 %v1497, %v1756
    %v1758 = vpop.f32.mrb[0].mxu0
    %v1759 = vadd.f32 %v1493, %v1758
    %v1760 = vpop.f32.mrb[0].mxu0
    %v1761 = vadd.f32 %v1497, %v1760
    %1762 = vmatprep.mubr.bf16.mxu0 %v1439
    %1763 = vmatmul.mubr.bf16.gmra.mrb[0].mxu0 %v1438
    %v1764 = vpop.f32.mrb[0].mxu0
    %v1765 = vadd.f32 %v1493, %v1764
    %v1766 = vpop.f32.mrb[0].mxu0
    %v1767 = vadd.f32 %v1497, %v1766
    %v1768 = vpop.f32.mrb[0].mxu0
    %v1769 = vadd.f32 %v1493, %v1768
    %v1770 = vpop.f32.mrb[0].mxu0
    %v1771 = vadd.f32 %v1497, %v1770
    %1772 = vmatprep.mubr.bf16.mxu0 %v1441
    %1773 = vmatmul.mubr.bf16.gmra.mrb[0].mxu0 %v1440
    %v1774 = vpop.f32.mrb[0].mxu0
    %v1775 = vadd.f32 %v1493, %v1774
    %v1776 = vpop.f32.mrb[0].mxu0
    %v1777 = vadd.f32 %v1497, %v1776
    %v1778 = vpop.f32.mrb[0].mxu0
    %v1779 = vadd.f32 %v1493, %v1778
    %v1780 = vpop.f32.mrb[0].mxu0
    %v1781 = vadd.f32 %v1497, %v1780
    %1782 = vmatprep.mubr.bf16.mxu0 %v1443
    %1783 = vmatmul.mubr.bf16.gmra.mrb[0].mxu0 %v1442
    %v1784 = vpop.f32.mrb[0].mxu0
    %v1785 = vadd.f32 %v1493, %v1784
    %v1786 = vpop.f32.mrb[0].mxu0
    %v1787 = vadd.f32 %v1497, %v1786
    %v1788 = vpop.f32.mrb[0].mxu0
    %v1789 = vadd.f32 %v1493, %v1788
    %v1790 = vpop.f32.mrb[0].mxu0
    %v1791 = vadd.f32 %v1497, %v1790
    %1792 = vmatprep.mubr.bf16.mxu0 %v1445
    %1793 = vmatmul.mubr.bf16.gmra.mrb[0].mxu0 %v1444
    %v1794 = vpop.f32.mrb[0].mxu0
    %v1795 = vadd.f32 %v1493, %v1794
    %v1796 = vpop.f32.mrb[0].mxu0
    %v1797 = vadd.f32 %v1497, %v1796
    %v1798 = vpop.f32.mrb[0].mxu0
    %v1799 = vadd.f32 %v1493, %v1798
    %v1800 = vpop.f32.mrb[0].mxu0
    %v1801 = vadd.f32 %v1497, %v1800
    %1802 = vmatprep.mubr.bf16.mxu0 %v1447
    %1803 = vmatmul.mubr.bf16.gmra.mrb[0].mxu0 %v1446
    %v1804 = vpop.f32.mrb[0].mxu0
    %v1805 = vadd.f32 %v1493, %v1804
    %v1806 = vpop.f32.mrb[0].mxu0
    %v1807 = vadd.f32 %v1497, %v1806
    %v1808 = vpop.f32.mrb[0].mxu0
    %v1809 = vadd.f32 %v1493, %v1808
    %v1810 = vpop.f32.mrb[0].mxu0
    %v1811 = vadd.f32 %v1497, %v1810
    %1812 = vmatprep.mubr.bf16.mxu0 %v1449
    %1813 = vmatmul.mubr.bf16.gmra.mrb[0].mxu0 %v1448
    %v1814 = vpop.f32.mrb[0].mxu0
    %v1815 = vadd.f32 %v1493, %v1814
    %v1816 = vpop.f32.mrb[0].mxu0
    %v1817 = vadd.f32 %v1497, %v1816
    %v1818 = vpop.f32.mrb[0].mxu0
    %v1819 = vadd.f32 %v1493, %v1818
    %v1820 = vpop.f32.mrb[0].mxu0
    %v1821 = vadd.f32 %v1497, %v1820
    %1822 = vmatprep.mubr.bf16.mxu0 %v1451
    %1823 = vmatmul.mubr.bf16.gmra.mrb[0].mxu0 %v1450
    %v1824 = vpop.f32.mrb[0].mxu0
    %v1825 = vadd.f32 %v1493, %v1824
    %v1826 = vpop.f32.mrb[0].mxu0
    %v1827 = vadd.f32 %v1497, %v1826
    %v1828 = vpop.f32.mrb[0].mxu0
    %v1829 = vadd.f32 %v1493, %v1828
    %v1830 = vpop.f32.mrb[0].mxu0
    %v1831 = vadd.f32 %v1497, %v1830
    %1832 = vmatprep.mubr.bf16.mxu0 %v1453
    %1833 = vmatmul.mubr.bf16.gmra.mrb[0].mxu0 %v1452
    %v1834 = vpop.f32.mrb[0].mxu0
    %v1835 = vadd.f32 %v1493, %v1834
    %v1836 = vpop.f32.mrb[0].mxu0
    %v1837 = vadd.f32 %v1497, %v1836
    %v1838 = vpop.f32.mrb[0].mxu0
    %v1839 = vadd.f32 %v1493, %v1838
    %v1840 = vpop.f32.mrb[0].mxu0
    %v1841 = vadd.f32 %v1497, %v1840
    %1842 = vmatprep.mubr.bf16.mxu0 %v1455
    %1843 = vmatmul.mubr.bf16.gmra.mrb[0].mxu0 %v1454
    %v1844 = vpop.f32.mrb[0].mxu0
    %v1845 = vadd.f32 %v1493, %v1844
    %v1846 = vpop.f32.mrb[0].mxu0
    %v1847 = vadd.f32 %v1497, %v1846
    %v1848 = vpop.f32.mrb[0].mxu0
    %v1849 = vadd.f32 %v1493, %v1848
    %v1850 = vpop.f32.mrb[0].mxu0
    %v1851 = vadd.f32 %v1497, %v1850
    %1852 = vdwg.mxu0
    %v1853 = vpack.c.bf16 %v1699, %v1695
    %v1854 = vpack.c.bf16 %v1701, %v1697
    %v1855 = vpack.c.bf16 %v1709, %v1705
    %v1856 = vpack.c.bf16 %v1711, %v1707
    %v1857 = vpack.c.bf16 %v1719, %v1715
    %v1858 = vpack.c.bf16 %v1721, %v1717
    %v1859 = vpack.c.bf16 %v1729, %v1725
    %v1860 = vpack.c.bf16 %v1731, %v1727
    %v1861 = vpack.c.bf16 %v1739, %v1735
    %v1862 = vpack.c.bf16 %v1741, %v1737
    %v1863 = vpack.c.bf16 %v1749, %v1745
    %v1864 = vpack.c.bf16 %v1751, %v1747
    %v1865 = vpack.c.bf16 %v1759, %v1755
    %v1866 = vpack.c.bf16 %v1761, %v1757
    %v1867 = vpack.c.bf16 %v1769, %v1765
    %v1868 = vpack.c.bf16 %v1771, %v1767
    %v1869 = vpack.c.bf16 %v1779, %v1775
    %v1870 = vpack.c.bf16 %v1781, %v1777
    %v1871 = vpack.c.bf16 %v1789, %v1785
    %v1872 = vpack.c.bf16 %v1791, %v1787
    %v1873 = vpack.c.bf16 %v1799, %v1795
    %v1874 = vpack.c.bf16 %v1801, %v1797
    %v1875 = vpack.c.bf16 %v1809, %v1805
    %v1876 = vpack.c.bf16 %v1811, %v1807
    %v1877 = vpack.c.bf16 %v1819, %v1815
    %v1878 = vpack.c.bf16 %v1821, %v1817
    %v1879 = vpack.c.bf16 %v1829, %v1825
    %v1880 = vpack.c.bf16 %v1831, %v1827
    %v1881 = vpack.c.bf16 %v1839, %v1835
    %v1882 = vpack.c.bf16 %v1841, %v1837
    %v1883 = vpack.c.bf16 %v1849, %v1845
    %v1884 = vpack.c.bf16 %v1851, %v1847
    %v1885 = vmax.bf16 %v1853, 0
    %v1886 = vmax.bf16 %v1854, 0
    %v1887 = vmax.bf16 %v1855, 0
    %v1888 = vmax.bf16 %v1856, 0
    %v1889 = vmax.bf16 %v1857, 0
    %v1890 = vmax.bf16 %v1858, 0
    %v1891 = vmax.bf16 %v1859, 0
    %v1892 = vmax.bf16 %v1860, 0
    %v1893 = vmax.bf16 %v1861, 0
    %v1894 = vmax.bf16 %v1862, 0
    %v1895 = vmax.bf16 %v1863, 0
    %v1896 = vmax.bf16 %v1864, 0
    %v1897 = vmax.bf16 %v1865, 0
    %v1898 = vmax.bf16 %v1866, 0
    %v1899 = vmax.bf16 %v1867, 0
    %v1900 = vmax.bf16 %v1868, 0
    %v1901 = vmax.bf16 %v1869, 0
    %v1902 = vmax.bf16 %v1870, 0
    %v1903 = vmax.bf16 %v1871, 0
    %v1904 = vmax.bf16 %v1872, 0
    %v1905 = vmax.bf16 %v1873, 0
    %v1906 = vmax.bf16 %v1874, 0
    %v1907 = vmax.bf16 %v1875, 0
    %v1908 = vmax.bf16 %v1876, 0
    %v1909 = vmax.bf16 %v1877, 0
    %v1910 = vmax.bf16 %v1878, 0
    %v1911 = vmax.bf16 %v1879, 0
    %v1912 = vmax.bf16 %v1880, 0
    %v1913 = vmax.bf16 %v1881, 0
    %v1914 = vmax.bf16 %v1882, 0
    %v1915 = vmax.bf16 %v1883, 0
    %v1916 = vmax.bf16 %v1884, 0
    %v1917 = vld [vmem:[%s9] sm:$0xf]
    %v1918 = vld [vmem:[%s9 + $0x4] sm:$0xf]
    %v1919 = vld [vmem:[%s9 + $0x8] sm:$0xf]
    %v1920 = vld [vmem:[%s9 + $0xc] sm:$0xf]
    %v1921 = vld [vmem:[%s9 + $0x10] sm:$0xf]
    %v1922 = vld [vmem:[%s9 + $0x14] sm:$0xf]
    %v1923 = vld [vmem:[%s9 + $0x18] sm:$0xf]
    %v1924 = vld [vmem:[%s9 + $0x1c] sm:$0xf]
    %v1925 = vld [vmem:[%s9 + $0x20] sm:$0xf]
    %v1926 = vld [vmem:[%s9 + $0x24] sm:$0xf]
    %v1927 = vld [vmem:[%s9 + $0x28] sm:$0xf]
    %v1928 = vld [vmem:[%s9 + $0x2c] sm:$0xf]
    %v1929 = vld [vmem:[%s9 + $0x30] sm:$0xf]
    %v1930 = vld [vmem:[%s9 + $0x34] sm:$0xf]
    %v1931 = vld [vmem:[%s9 + $0x38] sm:$0xf]
    %v1932 = vld [vmem:[%s9 + $0x3c] sm:$0xf]
    %v1933 = vld [vmem:[%s9 + $0x40] sm:$0xf]
    %v1934 = vld [vmem:[%s9 + $0x44] sm:$0xf]
    %v1935 = vld [vmem:[%s9 + $0x48] sm:$0xf]
    %v1936 = vld [vmem:[%s9 + $0x4c] sm:$0xf]
    %v1937 = vld [vmem:[%s9 + $0x50] sm:$0xf]
    %v1938 = vld [vmem:[%s9 + $0x54] sm:$0xf]
    %v1939 = vld [vmem:[%s9 + $0x58] sm:$0xf]
    %v1940 = vld [vmem:[%s9 + $0x5c] sm:$0xf]
    %v1941 = vld [vmem:[%s9 + $0x60] sm:$0xf]
    %v1942 = vld [vmem:[%s9 + $0x64] sm:$0xf]
    %v1943 = vld [vmem:[%s9 + $0x68] sm:$0xf]
    %v1944 = vld [vmem:[%s9 + $0x6c] sm:$0xf]
    %v1945 = vld [vmem:[%s9 + $0x70] sm:$0xf]
    %v1946 = vld [vmem:[%s9 + $0x74] sm:$0xf]
    %v1947 = vld [vmem:[%s9 + $0x78] sm:$0xf]
    %v1948 = vld [vmem:[%s9 + $0x7c] sm:$0xf]
    %v1949 = vld [vmem:[%s10] sm:$0x1]
    %v1951 = vlaneseq
    %v1952 = vshrl.u32 %v1951, 7
    %v1953 = vsub.s32 0, %v1952
    %v1954 = vrot.slane %v1949, %v1953
    %v1988 = vunpack.c.l.b16 %v1917
    %v1989 = vunpack.c.l.b16 %v1918
    %v1990 = vunpack.c.l.b16 %v1919
    %v1991 = vunpack.c.l.b16 %v1920
    %v1992 = vunpack.c.l.b16 %v1921
    %v1993 = vunpack.c.l.b16 %v1922
    %v1994 = vunpack.c.l.b16 %v1923
    %v1995 = vunpack.c.l.b16 %v1924
    %v1996 = vunpack.c.l.b16 %v1925
    %v1997 = vunpack.c.l.b16 %v1926
    %v1998 = vunpack.c.l.b16 %v1927
    %v1999 = vunpack.c.l.b16 %v1928
    %v2000 = vunpack.c.l.b16 %v1929
    %v2001 = vunpack.c.l.b16 %v1930
    %v2002 = vunpack.c.l.b16 %v1931
    %v2003 = vunpack.c.l.b16 %v1932
    %v2004 = vunpack.c.l.b16 %v1933
    %v2005 = vunpack.c.l.b16 %v1934
    %v2006 = vunpack.c.l.b16 %v1935
    %v2007 = vunpack.c.l.b16 %v1936
    %v2008 = vunpack.c.l.b16 %v1937
    %v2009 = vunpack.c.l.b16 %v1938
    %v2010 = vunpack.c.l.b16 %v1939
    %v2011 = vunpack.c.l.b16 %v1940
    %v2012 = vunpack.c.l.b16 %v1941
    %v2013 = vunpack.c.l.b16 %v1942
    %v2014 = vunpack.c.l.b16 %v1943
    %v2015 = vunpack.c.l.b16 %v1944
    %v2016 = vunpack.c.l.b16 %v1945
    %v2017 = vunpack.c.l.b16 %v1946
    %v2018 = vunpack.c.l.b16 %v1947
    %v2019 = vunpack.c.l.b16 %v1948
    %v2020 = vpack.c.b16 %v1989, %v1988
    %v2021 = vpack.c.b16 %v1991, %v1990
    %v2022 = vpack.c.b16 %v1993, %v1992
    %v2023 = vpack.c.b16 %v1995, %v1994
    %v2024 = vpack.c.b16 %v1997, %v1996
    %v2025 = vpack.c.b16 %v1999, %v1998
    %v2026 = vpack.c.b16 %v2001, %v2000
    %v2027 = vpack.c.b16 %v2003, %v2002
    %v2028 = vpack.c.b16 %v2005, %v2004
    %v2029 = vpack.c.b16 %v2007, %v2006
    %v2030 = vpack.c.b16 %v2009, %v2008
    %v2031 = vpack.c.b16 %v2011, %v2010
    %v2032 = vpack.c.b16 %v2013, %v2012
    %v2033 = vpack.c.b16 %v2015, %v2014
    %v2034 = vpack.c.b16 %v2017, %v2016
    %v2035 = vpack.c.b16 %v2019, %v2018
    %2052 = vmatprep.subr.bf16.mxu0 0
    %2053 = vmatpush1.bf16.msra.mxu0 %v2020
    %2054 = vmatprep.subr.bf16.mxu0 0
    %2055 = vmatpush1.bf16.msra.mxu0 %v2021
    %2056 = vmatprep.subr.bf16.mxu0 0
    %2057 = vmatpush1.bf16.msra.mxu0 %v2022
    %2058 = vmatprep.subr.bf16.mxu0 0
    %2059 = vmatpush1.bf16.msra.mxu0 %v2023
    %2060 = vmatprep.subr.bf16.mxu0 0
    %2061 = vmatpush1.bf16.msra.mxu0 %v2024
    %2062 = vmatprep.subr.bf16.mxu0 0
    %2063 = vmatpush1.bf16.msra.mxu0 %v2025
    %2064 = vmatprep.subr.bf16.mxu0 0
    %2065 = vmatpush1.bf16.msra.mxu0 %v2026
    %2066 = vmatprep.subr.bf16.mxu0 0
    %2067 = vmatpush1.bf16.msra.mxu0 %v2027
    %2068 = vmatprep.subr.bf16.mxu0 0
    %2069 = vmatpush1.bf16.msra.mxu0 %v2028
    %2070 = vmatprep.subr.bf16.mxu0 0
    %2071 = vmatpush1.bf16.msra.mxu0 %v2029
    %2072 = vmatprep.subr.bf16.mxu0 0
    %2073 = vmatpush1.bf16.msra.mxu0 %v2030
    %2074 = vmatprep.subr.bf16.mxu0 0
    %2075 = vmatpush1.bf16.msra.mxu0 %v2031
    %2076 = vmatprep.subr.bf16.mxu0 0
    %2077 = vmatpush1.bf16.msra.mxu0 %v2032
    %2078 = vmatprep.subr.bf16.mxu0 0
    %2079 = vmatpush1.bf16.msra.mxu0 %v2033
    %2080 = vmatprep.subr.bf16.mxu0 0
    %2081 = vmatpush1.bf16.msra.mxu0 %v2034
    %2082 = vmatprep.subr.bf16.mxu0 0
    %2083 = vmatpush1.bf16.msra.mxu0 %v2035
    %2084 = vmatprep.mubr.bf16.mxu0 %v1886
    %2085 = vmatmul.mubr.bf16.gmra.mrb[0].mxu0 %v1885
    %v2086 = vpop.f32.mrb[0].mxu0
    %v2087 = vadd.f32 %v1954, %v2086
    %v2088 = vpop.f32.mrb[0].mxu0
    %v2089 = vpop.f32.mrb[0].mxu0
    %v2090 = vadd.f32 %v1954, %v2089
    %v2091 = vpop.f32.mrb[0].mxu0
    %2092 = vmatprep.mubr.bf16.mxu0 %v1888
    %2093 = vmatmul.mubr.bf16.gmra.mrb[0].mxu0 %v1887
    %v2094 = vpop.f32.mrb[0].mxu0
    %v2095 = vadd.f32 %v1954, %v2094
    %v2096 = vpop.f32.mrb[0].mxu0
    %v2097 = vpop.f32.mrb[0].mxu0
    %v2098 = vadd.f32 %v1954, %v2097
    %v2099 = vpop.f32.mrb[0].mxu0
    %2100 = vmatprep.mubr.bf16.mxu0 %v1890
    %2101 = vmatmul.mubr.bf16.gmra.mrb[0].mxu0 %v1889
    %v2102 = vpop.f32.mrb[0].mxu0
    %v2103 = vadd.f32 %v1954, %v2102
    %v2104 = vpop.f32.mrb[0].mxu0
    %v2105 = vpop.f32.mrb[0].mxu0
    %v2106 = vadd.f32 %v1954, %v2105
    %v2107 = vpop.f32.mrb[0].mxu0
    %2108 = vmatprep.mubr.bf16.mxu0 %v1892
    %2109 = vmatmul.mubr.bf16.gmra.mrb[0].mxu0 %v1891
    %v2110 = vpop.f32.mrb[0].mxu0
    %v2111 = vadd.f32 %v1954, %v2110
    %v2112 = vpop.f32.mrb[0].mxu0
    %v2113 = vpop.f32.mrb[0].mxu0
    %v2114 = vadd.f32 %v1954, %v2113
    %v2115 = vpop.f32.mrb[0].mxu0
    %2116 = vmatprep.mubr.bf16.mxu0 %v1894
    %2117 = vmatmul.mubr.bf16.gmra.mrb[0].mxu0 %v1893
    %v2118 = vpop.f32.mrb[0].mxu0
    %v2119 = vadd.f32 %v1954, %v2118
    %v2120 = vpop.f32.mrb[0].mxu0
    %v2121 = vpop.f32.mrb[0].mxu0
    %v2122 = vadd.f32 %v1954, %v2121
    %v2123 = vpop.f32.mrb[0].mxu0
    %2124 = vmatprep.mubr.bf16.mxu0 %v1896
    %2125 = vmatmul.mubr.bf16.gmra.mrb[0].mxu0 %v1895
    %v2126 = vpop.f32.mrb[0].mxu0
    %v2127 = vadd.f32 %v1954, %v2126
    %v2128 = vpop.f32.mrb[0].mxu0
    %v2129 = vpop.f32.mrb[0].mxu0
    %v2130 = vadd.f32 %v1954, %v2129
    %v2131 = vpop.f32.mrb[0].mxu0
    %2132 = vmatprep.mubr.bf16.mxu0 %v1898
    %2133 = vmatmul.mubr.bf16.gmra.mrb[0].mxu0 %v1897
    %v2134 = vpop.f32.mrb[0].mxu0
    %v2135 = vadd.f32 %v1954, %v2134
    %v2136 = vpop.f32.mrb[0].mxu0
    %v2137 = vpop.f32.mrb[0].mxu0
    %v2138 = vadd.f32 %v1954, %v2137
    %v2139 = vpop.f32.mrb[0].mxu0
    %2140 = vmatprep.mubr.bf16.mxu0 %v1900
    %2141 = vmatmul.mubr.bf16.gmra.mrb[0].mxu0 %v1899
    %v2142 = vpop.f32.mrb[0].mxu0
    %v2143 = vadd.f32 %v1954, %v2142
    %v2144 = vpop.f32.mrb[0].mxu0
    %v2145 = vpop.f32.mrb[0].mxu0
    %v2146 = vadd.f32 %v1954, %v2145
    %v2147 = vpop.f32.mrb[0].mxu0
    %2148 = vmatprep.mubr.bf16.mxu0 %v1902
    %2149 = vmatmul.mubr.bf16.gmra.mrb[0].mxu0 %v1901
    %v2150 = vpop.f32.mrb[0].mxu0
    %v2151 = vadd.f32 %v1954, %v2150
    %v2152 = vpop.f32.mrb[0].mxu0
    %v2153 = vpop.f32.mrb[0].mxu0
    %v2154 = vadd.f32 %v1954, %v2153
    %v2155 = vpop.f32.mrb[0].mxu0
    %2156 = vmatprep.mubr.bf16.mxu0 %v1904
    %2157 = vmatmul.mubr.bf16.gmra.mrb[0].mxu0 %v1903
    %v2158 = vpop.f32.mrb[0].mxu0
    %v2159 = vadd.f32 %v1954, %v2158
    %v2160 = vpop.f32.mrb[0].mxu0
    %v2161 = vpop.f32.mrb[0].mxu0
    %v2162 = vadd.f32 %v1954, %v2161
    %v2163 = vpop.f32.mrb[0].mxu0
    %2164 = vmatprep.mubr.bf16.mxu0 %v1906
    %2165 = vmatmul.mubr.bf16.gmra.mrb[0].mxu0 %v1905
    %v2166 = vpop.f32.mrb[0].mxu0
    %v2167 = vadd.f32 %v1954, %v2166
    %v2168 = vpop.f32.mrb[0].mxu0
    %v2169 = vpop.f32.mrb[0].mxu0
    %v2170 = vadd.f32 %v1954, %v2169
    %v2171 = vpop.f32.mrb[0].mxu0
    %2172 = vmatprep.mubr.bf16.mxu0 %v1908
    %2173 = vmatmul.mubr.bf16.gmra.mrb[0].mxu0 %v1907
    %v2174 = vpop.f32.mrb[0].mxu0
    %v2175 = vadd.f32 %v1954, %v2174
    %v2176 = vpop.f32.mrb[0].mxu0
    %v2177 = vpop.f32.mrb[0].mxu0
    %v2178 = vadd.f32 %v1954, %v2177
    %v2179 = vpop.f32.mrb[0].mxu0
    %2180 = vmatprep.mubr.bf16.mxu0 %v1910
    %2181 = vmatmul.mubr.bf16.gmra.mrb[0].mxu0 %v1909
    %v2182 = vpop.f32.mrb[0].mxu0
    %v2183 = vadd.f32 %v1954, %v2182
    %v2184 = vpop.f32.mrb[0].mxu0
    %v2185 = vpop.f32.mrb[0].mxu0
    %v2186 = vadd.f32 %v1954, %v2185
    %v2187 = vpop.f32.mrb[0].mxu0
    %2188 = vmatprep.mubr.bf16.mxu0 %v1912
    %2189 = vmatmul.mubr.bf16.gmra.mrb[0].mxu0 %v1911
    %v2190 = vpop.f32.mrb[0].mxu0
    %v2191 = vadd.f32 %v1954, %v2190
    %v2192 = vpop.f32.mrb[0].mxu0
    %v2193 = vpop.f32.mrb[0].mxu0
    %v2194 = vadd.f32 %v1954, %v2193
    %v2195 = vpop.f32.mrb[0].mxu0
    %2196 = vmatprep.mubr.bf16.mxu0 %v1914
    %2197 = vmatmul.mubr.bf16.gmra.mrb[0].mxu0 %v1913
    %v2198 = vpop.f32.mrb[0].mxu0
    %v2199 = vadd.f32 %v1954, %v2198
    %v2200 = vpop.f32.mrb[0].mxu0
    %v2201 = vpop.f32.mrb[0].mxu0
    %v2202 = vadd.f32 %v1954, %v2201
    %v2203 = vpop.f32.mrb[0].mxu0
    %2204 = vmatprep.mubr.bf16.mxu0 %v1916
    %2205 = vmatmul.mubr.bf16.gmra.mrb[0].mxu0 %v1915
    %v2206 = vpop.f32.mrb[0].mxu0
    %v2207 = vadd.f32 %v1954, %v2206
    %v2208 = vpop.f32.mrb[0].mxu0
    %v2209 = vpop.f32.mrb[0].mxu0
    %v2210 = vadd.f32 %v1954, %v2209
    %v2211 = vpop.f32.mrb[0].mxu0
    %2212 = vdwg.mxu0
    %vm2213 = vcmask 7168
    %2214 = vst.msk [vmem:[%s11] sm:$0xff] %vm2213, %v2087
    %2215 = vst.msk [vmem:[%s11 + $0x8] sm:$0xff] %vm2213, %v2090
    %2216 = vst.msk [vmem:[%s11 + $0x10] sm:$0xff] %vm2213, %v2095
    %2217 = vst.msk [vmem:[%s11 + $0x18] sm:$0xff] %vm2213, %v2098
    %2218 = vst.msk [vmem:[%s11 + $0x20] sm:$0xff] %vm2213, %v2103
    %2219 = vst.msk [vmem:[%s11 + $0x28] sm:$0xff] %vm2213, %v2106
    %2220 = vst.msk [vmem:[%s11 + $0x30] sm:$0xff] %vm2213, %v2111
    %2221 = vst.msk [vmem:[%s11 + $0x38] sm:$0xff] %vm2213, %v2114
    %2222 = vst.msk [vmem:[%s11 + $0x40] sm:$0xff] %vm2213, %v2119
    %2223 = vst.msk [vmem:[%s11 + $0x48] sm:$0xff] %vm2213, %v2122
    %2224 = vst.msk [vmem:[%s11 + $0x50] sm:$0xff] %vm2213, %v2127
    %2225 = vst.msk [vmem:[%s11 + $0x58] sm:$0xff] %vm2213, %v2130
    %2226 = vst.msk [vmem:[%s11 + $0x60] sm:$0xff] %vm2213, %v2135
    %2227 = vst.msk [vmem:[%s11 + $0x68] sm:$0xff] %vm2213, %v2138
    %2228 = vst.msk [vmem:[%s11 + $0x70] sm:$0xff] %vm2213, %v2143
    %2229 = vst.msk [vmem:[%s11 + $0x78] sm:$0xff] %vm2213, %v2146
    %2230 = vst.msk [vmem:[%s11 + $0x80] sm:$0xff] %vm2213, %v2151
    %2231 = vst.msk [vmem:[%s11 + $0x88] sm:$0xff] %vm2213, %v2154
    %2232 = vst.msk [vmem:[%s11 + $0x90] sm:$0xff] %vm2213, %v2159
    %2233 = vst.msk [vmem:[%s11 + $0x98] sm:$0xff] %vm2213, %v2162
    %2234 = vst.msk [vmem:[%s11 + $0xa0] sm:$0xff] %vm2213, %v2167
    %2235 = vst.msk [vmem:[%s11 + $0xa8] sm:$0xff] %vm2213, %v2170
    %2236 = vst.msk [vmem:[%s11 + $0xb0] sm:$0xff] %vm2213, %v2175
    %2237 = vst.msk [vmem:[%s11 + $0xb8] sm:$0xff] %vm2213, %v2178
    %2238 = vst.msk [vmem:[%s11 + $0xc0] sm:$0xff] %vm2213, %v2183
    %2239 = vst.msk [vmem:[%s11 + $0xc8] sm:$0xff] %vm2213, %v2186
    %2240 = vst.msk [vmem:[%s11 + $0xd0] sm:$0xff] %vm2213, %v2191
    %2241 = vst.msk [vmem:[%s11 + $0xd8] sm:$0xff] %vm2213, %v2194
    %2242 = vst.msk [vmem:[%s11 + $0xe0] sm:$0xff] %vm2213, %v2199
    %2243 = vst.msk [vmem:[%s11 + $0xe8] sm:$0xff] %vm2213, %v2202
    %2244 = vst.msk [vmem:[%s11 + $0xf0] sm:$0xff] %vm2213, %v2207
    %2245 = vst.msk [vmem:[%s11 + $0xf8] sm:$0xff] %vm2213, %v2210
    // Predicated region
    $region58: #{tpu_custom_call.1} parent=1 // pred_check
      _
    $region59: #{tpu_custom_call.1} parent=1 // pred_check_branch
      %2247 = sbr.rel (0) target = $region61
    $region60: #{tpu_custom_call.1} parent=1 // pred_region
      _
    $region61: #{tpu_custom_call.1} parent=1 // pred_fallthru
      _
    // Predicated region
    $region62: #{tpu_custom_call.1} parent=1 // pred_check
      _
    $region63: #{tpu_custom_call.1} parent=1 // pred_check_branch
      %2249 = sbr.rel (0) target = $region65
    $region64: #{tpu_custom_call.1} parent=1 // pred_region
      _
    $region65: #{tpu_custom_call.1} parent=1 // pred_fallthru
      _
    %2250 = vsyncpa [#allocation3], 1
    %2251 = vsyncpa [#allocation5], 1

</llo_original>
